<compile_context>
chip_gen: v7x
topology: tpu7x:2x2x1
jax: 0.10.0
libtpu: 0.0.40
codegen_flags: <defaults>
</compile_context>

<pallas_src>
import math

import jax
import jax.numpy as jnp
from jax.experimental import pallas as pl
from jax.experimental.pallas import tpu as pltpu


# ----------------------------- glue helpers ----------------------------------
def _conv_band(w_hwio, W):
    """(kh, kw, Cin, Cout) 3x3 SAME conv -> (kh*W*Cin, W*Cout) banded matrix.

    Row index (dy*W + w_in)*Cin + ci, col index w_out*Cout + co holds
    w[dy, w_in - w_out + 1, ci, co] (zero outside the band == zero padding in W).
    """
    kh, kw, cin, cout = w_hwio.shape
    wi = jnp.arange(W)[:, None]                      # (W, 1) input col
    wo = jnp.arange(W)[None, :]                      # (1, W) output col
    dx = wi - wo + 1                                 # (W, W)
    valid = ((dx >= 0) & (dx < kw)).astype(w_hwio.dtype)
    dx_c = jnp.clip(dx, 0, kw - 1)
    taps = w_hwio[:, dx_c] * valid[None, :, :, None, None]   # (kh, W, W, cin, cout)
    return taps.transpose(0, 1, 3, 2, 4).reshape(kh * W * cin, W * cout)


def _block_diag_1x1(w, W):
    """(Cin, Cout) 1x1 conv -> (W*Cin, W*Cout) block-diagonal matrix."""
    cin, cout = w.shape
    eye = jnp.eye(W, dtype=w.dtype)
    return jnp.einsum("pq,io->piqo", eye, w).reshape(W * cin, W * cout)


# ------------------------------- kernel ---------------------------------------
def _make_kernel(H):
    def lrelu(v):                                    # LeakyReLU, slope 0.01
        return jnp.where(v > 0, v, 0.01 * v)

    def hardswish(v):
        return v * jnp.clip(v + 3.0, 0.0, 6.0) * (1.0 / 6.0)

    def shift_stack(slab):
        """(R, L) slab -> (R, 3L): [row-1 | row | row+1], zero at image edges."""
        R, L = slab.shape
        h_idx = jax.lax.broadcasted_iota(jnp.int32, (R, L), 0) % H
        z = jnp.zeros((1, L), slab.dtype)
        zero = jnp.zeros_like(slab)
        up = jnp.where(h_idx != 0,
                       jnp.concatenate([z, slab[:-1]], axis=0), zero)
        dn = jnp.where(h_idx != H - 1,
                       jnp.concatenate([slab[1:], z], axis=0), zero)
        return jnp.concatenate([up, slab, dn], axis=1)

    def kernel(x_ref, m1_ref, s1_ref, b1_ref, m2_ref, s2_ref, b2_ref,
               pw_ref, wca1_ref, sca_ref, bca_ref, wfh_ref,
               sel_ref, caw_ref, scaw_ref, bcaw_ref, wfw_ref, rep_ref,
               ms_ref, ss_ref, bs_ref, o_ref):
        f32 = jnp.float32
        xb = x_ref[...].astype(jnp.bfloat16)                      # (R, W*Cin)

        # conv1 (3x3 SAME, no bias) as one banded matmul + bn1 + LeakyReLU
        o1 = jnp.dot(shift_stack(xb), m1_ref[...],
                     preferred_element_type=f32)                  # (R, W*Cmid)
        o1 = lrelu(o1 * s1_ref[...] + b1_ref[...])

        # conv2 (3x3 SAME, no bias) + bn2
        o2 = jnp.dot(shift_stack(o1.astype(jnp.bfloat16)), m2_ref[...],
                     preferred_element_type=f32)                  # (R, W*Cout)
        o2 = o2 * s2_ref[...] + b2_ref[...]

        # ---- CA block (coordinate attention, reduction=8) ----
        # H branch: mean over W, then per-row 1x1 convs.
        xh = jnp.dot(o2, pw_ref[...], preferred_element_type=f32)        # (R, Cout)
        yh = hardswish(jnp.dot(xh, wca1_ref[...], preferred_element_type=f32)
                       * sca_ref[...] + bca_ref[...])                    # (R, Cca)
        a_h = jax.nn.sigmoid(jnp.dot(yh, wfh_ref[...],
                                     preferred_element_type=f32))        # (R, W*Cout)

        # W branch: mean over H per image, all in the lane-flattened layout.
        xw = jnp.dot(sel_ref[...], o2, preferred_element_type=f32)       # (Bb, W*Cout)
        yw = hardswish(jnp.dot(xw, caw_ref[...], preferred_element_type=f32)
                       * scaw_ref[...] + bcaw_ref[...])                  # (Bb, W*Cca)
        a_w = jax.nn.sigmoid(jnp.dot(yw, wfw_ref[...],
                                     preferred_element_type=f32))        # (Bb, W*Cout)
        a_w = jnp.dot(rep_ref[...], a_w, preferred_element_type=f32)     # (R, W*Cout)

        # ---- shortcut: 1x1 conv (block-diagonal matmul) + bn ----
        sc = jnp.dot(xb, ms_ref[...], preferred_element_type=f32)        # (R, W*Cout)
        sc = sc * ss_ref[...] + bs_ref[...]

        o_ref[...] = lrelu(o2 * a_h * a_w + sc)

    return kernel


# ------------------------------- wrapper ---------------------------------------
def residual_block_pallas(x, params, *, batch_blocks=1):
    """x: (B, H, W, Cin) float32 NHWC.

    batch_blocks: number of grid steps splitting the batch. 1 = fully fused
    (best on single-TensorCore v5e/v6e); set 2 on v7x so both TensorCores get a
    parallel block.
    """
    B, H, W, Cin = x.shape
    assert B % batch_blocks == 0
    Bb = B // batch_blocks

    w1, w2, ws = params["w1"], params["w2"], params["ws"]
    Cmid, Cout = w1.shape[-1], w2.shape[-1]
    bf16, f32 = jnp.bfloat16, jnp.float32

    # Lane-dense slab layout (pure layout plumbing).
    x_slab = x.reshape(B * H, W * Cin)

    # Banded / block-diagonal weights (pre-cast to bf16 for the MXU).
    m1 = _conv_band(w1, W).astype(bf16)                    # (3*W*Cin,  W*Cmid)
    m2 = _conv_band(w2, W).astype(bf16)                    # (3*W*Cmid, W*Cout)
    ms = _block_diag_1x1(ws, W).astype(bf16)               # (W*Cin,    W*Cout)

    # Folded BN scale/shift, tiled to lane width.
    s1_t, b1_t = jnp.tile(params["s1"], (1, W)), jnp.tile(params["b1"], (1, W))
    s2_t, b2_t = jnp.tile(params["s2"], (1, W)), jnp.tile(params["b2"], (1, W))
    ss_t, bs_t = jnp.tile(params["ss"], (1, W)), jnp.tile(params["bs"], (1, W))

    # CA block helpers (tiny; kept in f32).
    pw = jnp.tile(jnp.eye(Cout, dtype=f32), (W, 1)) / W    # (W*Cout, Cout) mean over W
    wca1 = params["wca1"].astype(f32)                      # (Cout, Cca)
    sca, bca = params["sca"], params["bca"]                # (1, Cca)
    wfh_t = jnp.tile(params["wfh"], (1, W))                # (Cca, W*Cout) bcast over W
    caw = _block_diag_1x1(params["wca1"], W)               # (W*Cout, W*Cca)
    scaw_t, bcaw_t = jnp.tile(sca, (1, W)), jnp.tile(bca, (1, W))   # (1, W*Cca)
    wfw_b = _block_diag_1x1(params["wfw"], W)              # (W*Cca, W*Cout)
    sel = jnp.kron(jnp.eye(Bb, dtype=f32), jnp.ones((1, H), f32)) / H   # (Bb, Bb*H)
    rep = jnp.kron(jnp.eye(Bb, dtype=f32), jnp.ones((H, 1), f32))       # (Bb*H, Bb)

    plist = [m1, s1_t, b1_t, m2, s2_t, b2_t,
             pw, wca1, sca, bca, wfh_t,
             sel, caw, scaw_t, bcaw_t, wfw_b, rep,
             ms, ss_t, bs_t]

    def full_spec(a):
        return pl.BlockSpec(a.shape, lambda i, _n=a.ndim: (0,) * _n)

    in_specs = [pl.BlockSpec((Bb * H, W * Cin), lambda i: (i, 0))]
    in_specs += [full_spec(p) for p in plist]

    out = pl.pallas_call(
        _make_kernel(H),
        out_shape=jax.ShapeDtypeStruct((B * H, W * Cout), f32),
        grid_spec=pltpu.PrefetchScalarGridSpec(
            num_scalar_prefetch=0,
            grid=(batch_blocks,),
            in_specs=in_specs,
            out_specs=pl.BlockSpec((Bb * H, W * Cout), lambda i: (i, 0)),
        ),
        compiler_params=pltpu.CompilerParams(
            dimension_semantics=("parallel",)),
    )(x_slab, *plist)

    return out.reshape(B, H, W, Cout)


# ------------------------- pure-JAX reference --------------------------------
def residual_block_ref(x, params):
    def conv3x3(a, w):
        return jax.lax.conv_general_dilated(
            a, w, (1, 1), "SAME", dimension_numbers=("NHWC", "HWIO", "NHWC"))

    def lrelu(v):
        return jnp.where(v > 0, v, 0.01 * v)

    H = x.shape[1]
    out = conv3x3(x, params["w1"]) * params["s1"] + params["b1"]
    out = lrelu(out)
    out = conv3x3(out, params["w2"]) * params["s2"] + params["b2"]
    xh = out.mean(axis=2)                       # (B, H, Cout)
    xw = out.mean(axis=1)                       # (B, W, Cout)
    cat = jnp.concatenate([xh, xw], axis=1)     # (B, H+W, Cout)
    y = cat @ params["wca1"] * params["sca"] + params["bca"]
    y = y * jnp.clip(y + 3.0, 0.0, 6.0) / 6.0
    a_h = jax.nn.sigmoid(y[:, :H] @ params["wfh"])
    a_w = jax.nn.sigmoid(y[:, H:] @ params["wfw"])
    out = out * a_h[:, :, None, :] * a_w[:, None, :, :]
    sc = (x @ params["ws"]) * params["ss"] + params["bs"]
    return lrelu(out + sc)


# ----------------------------- param setup ------------------------------------
def fold_bn(key, c, eps=1e-5):
    k1, k2, k3, k4 = jax.random.split(key, 4)
    gamma = 0.5 + jax.random.uniform(k1, (c,), jnp.float32)
    beta = 0.1 * jax.random.normal(k2, (c,), jnp.float32)
    mean = 0.1 * jax.random.normal(k3, (c,), jnp.float32)
    var = 0.5 + jax.random.uniform(k4, (c,), jnp.float32)
    scale = gamma / jnp.sqrt(var + eps)
    shift = beta - mean * scale
    return scale.reshape(1, c), shift.reshape(1, c)


def make_params(key, in_channels, out_channels, ratio=2, ca_reduction=8):
    init_channels = math.ceil(out_channels / ratio)
    cca = out_channels // ca_reduction
    ks = jax.random.split(key, 12)
    p = {}
    p["w1"] = 0.1 * jax.random.normal(ks[0], (3, 3, in_channels, init_channels), jnp.float32)
    p["s1"], p["b1"] = fold_bn(ks[1], init_channels)
    p["w2"] = 0.1 * jax.random.normal(ks[2], (3, 3, init_channels, out_channels), jnp.float32)
    p["s2"], p["b2"] = fold_bn(ks[3], out_channels)
    # CA block
    p["wca1"] = 0.2 * jax.random.normal(ks[4], (out_channels, cca), jnp.float32)
    p["sca"], p["bca"] = fold_bn(ks[5], cca)
    p["wfh"] = 0.2 * jax.random.normal(ks[6], (cca, out_channels), jnp.float32)
    p["wfw"] = 0.2 * jax.random.normal(ks[7], (cca, out_channels), jnp.float32)
    # shortcut (1x1 conv + bn, since in_channels != out_channels)
    p["ws"] = 0.1 * jax.random.normal(ks[8], (in_channels, out_channels), jnp.float32)
    p["ss"], p["bs"] = fold_bn(ks[9], out_channels)
    return p


if __name__ == "__main__":
    B, H, W = 2, 16, 16
    in_channels, out_channels = 8, 16     # init_channels = ceil(16/2) = 8, CA mid = 2

    key = jax.random.PRNGKey(0)
    kx, kp = jax.random.split(key)
    x = jax.random.normal(kx, (B, H, W, in_channels), jnp.float32)   # NHWC
    params = make_params(kp, in_channels, out_channels)

    out = residual_block_pallas(x, params)        # fully fused batch (batch_blocks=1)
    out = jax.block_until_ready(out)

    ref = jax.block_until_ready(residual_block_ref(x, params))
    assert out.shape == (B, H, W, out_channels)
    # bf16 MXU operands (f32 accumulation) -> looser tolerance than pure f32.
    err = jnp.max(jnp.abs(out - ref))
    assert jnp.allclose(out, ref, atol=5e-2, rtol=1e-1), f"max abs err {err}"

    print("KERNEL_OK")
</pallas_src>

<mosaic_0001>
module attributes {stable_mosaic.version = 11 : i64} {
  func.func @kernel(%arg0: i32, %arg1: memref<32x128xf32, #tpu.memory_space<vmem>>, %arg2: memref<384x128xbf16, #tpu.memory_space<vmem>>, %arg3: memref<1x128xf32, #tpu.memory_space<vmem>>, %arg4: memref<1x128xf32, #tpu.memory_space<vmem>>, %arg5: memref<384x256xbf16, #tpu.memory_space<vmem>>, %arg6: memref<1x256xf32, #tpu.memory_space<vmem>>, %arg7: memref<1x256xf32, #tpu.memory_space<vmem>>, %arg8: memref<256x16xf32, #tpu.memory_space<vmem>>, %arg9: memref<16x2xf32, #tpu.memory_space<vmem>>, %arg10: memref<1x2xf32, #tpu.memory_space<vmem>>, %arg11: memref<1x2xf32, #tpu.memory_space<vmem>>, %arg12: memref<2x256xf32, #tpu.memory_space<vmem>>, %arg13: memref<2x32xf32, #tpu.memory_space<vmem>>, %arg14: memref<256x32xf32, #tpu.memory_space<vmem>>, %arg15: memref<1x32xf32, #tpu.memory_space<vmem>>, %arg16: memref<1x32xf32, #tpu.memory_space<vmem>>, %arg17: memref<32x256xf32, #tpu.memory_space<vmem>>, %arg18: memref<32x2xf32, #tpu.memory_space<vmem>>, %arg19: memref<128x256xbf16, #tpu.memory_space<vmem>>, %arg20: memref<1x256xf32, #tpu.memory_space<vmem>>, %arg21: memref<1x256xf32, #tpu.memory_space<vmem>>, %arg22: memref<32x256xf32, #tpu.memory_space<vmem>>) attributes {dimension_semantics = [#tpu.dimension_semantics<parallel>], iteration_bounds = array<i64: 1>, scalar_prefetch = 0 : i64, scratch_operands = 0 : i64, tpu.core_type = #tpu.core_type<tc>, window_params = [{transform_indices = @transform_0, window_bounds = array<i64: 32, 128>}, {pipeline_mode = #tpu.pipeline_mode<synchronous>, transform_indices = @transform_1, window_bounds = array<i64: 384, 128>}, {pipeline_mode = #tpu.pipeline_mode<synchronous>, transform_indices = @transform_2, window_bounds = array<i64: 1, 128>}, {pipeline_mode = #tpu.pipeline_mode<synchronous>, transform_indices = @transform_3, window_bounds = array<i64: 1, 128>}, {pipeline_mode = #tpu.pipeline_mode<synchronous>, transform_indices = @transform_4, window_bounds = array<i64: 384, 256>}, {pipeline_mode = #tpu.pipeline_mode<synchronous>, transform_indices = @transform_5, window_bounds = array<i64: 1, 256>}, {pipeline_mode = #tpu.pipeline_mode<synchronous>, transform_indices = @transform_6, window_bounds = array<i64: 1, 256>}, {pipeline_mode = #tpu.pipeline_mode<synchronous>, transform_indices = @transform_7, window_bounds = array<i64: 256, 16>}, {pipeline_mode = #tpu.pipeline_mode<synchronous>, transform_indices = @transform_8, window_bounds = array<i64: 16, 2>}, {pipeline_mode = #tpu.pipeline_mode<synchronous>, transform_indices = @transform_9, window_bounds = array<i64: 1, 2>}, {pipeline_mode = #tpu.pipeline_mode<synchronous>, transform_indices = @transform_10, window_bounds = array<i64: 1, 2>}, {pipeline_mode = #tpu.pipeline_mode<synchronous>, transform_indices = @transform_11, window_bounds = array<i64: 2, 256>}, {pipeline_mode = #tpu.pipeline_mode<synchronous>, transform_indices = @transform_12, window_bounds = array<i64: 2, 32>}, {pipeline_mode = #tpu.pipeline_mode<synchronous>, transform_indices = @transform_13, window_bounds = array<i64: 256, 32>}, {pipeline_mode = #tpu.pipeline_mode<synchronous>, transform_indices = @transform_14, window_bounds = array<i64: 1, 32>}, {pipeline_mode = #tpu.pipeline_mode<synchronous>, transform_indices = @transform_15, window_bounds = array<i64: 1, 32>}, {pipeline_mode = #tpu.pipeline_mode<synchronous>, transform_indices = @transform_16, window_bounds = array<i64: 32, 256>}, {pipeline_mode = #tpu.pipeline_mode<synchronous>, transform_indices = @transform_17, window_bounds = array<i64: 32, 2>}, {pipeline_mode = #tpu.pipeline_mode<synchronous>, transform_indices = @transform_18, window_bounds = array<i64: 128, 256>}, {pipeline_mode = #tpu.pipeline_mode<synchronous>, transform_indices = @transform_19, window_bounds = array<i64: 1, 256>}, {pipeline_mode = #tpu.pipeline_mode<synchronous>, transform_indices = @transform_20, window_bounds = array<i64: 1, 256>}, {transform_indices = @transform_21, window_bounds = array<i64: 32, 256>}]} {
    %c0 = arith.constant 0 : index
    %c0_0 = arith.constant 0 : index
    %0 = vector.load %arg1[%c0, %c0_0] : memref<32x128xf32, #tpu.memory_space<vmem>>, vector<32x128xf32>
    %1 = arith.truncf %0 : vector<32x128xf32> to vector<32x128xbf16>
    %2 = tpu.iota {dimensions = array<i32: 0>} : vector<32x128xi32>
    %c16_i32 = arith.constant 16 : i32
    %c0_i32 = arith.constant 0 : i32
    %3 = arith.cmpi eq, %c16_i32, %c0_i32 : i32
    %c1_i32 = arith.constant 1 : i32
    %4 = arith.select %3, %c1_i32, %c16_i32 : i32
    %5 = vector.broadcast %4 : i32 to vector<32x128xi32>
    %6 = arith.remsi %2, %5 : vector<32x128xi32>
    %c0_i32_1 = arith.constant 0 : i32
    %7 = vector.broadcast %c0_i32_1 : i32 to vector<32x128xi32>
    %8 = arith.cmpi ne, %6, %7 : vector<32x128xi32>
    %c0_i32_2 = arith.constant 0 : i32
    %9 = vector.broadcast %c0_i32_2 : i32 to vector<32x128xi32>
    %10 = arith.cmpi slt, %6, %9 : vector<32x128xi32>
    %c0_i32_3 = arith.constant 0 : i32
    %11 = arith.cmpi slt, %4, %c0_i32_3 : i32
    %12 = vector.broadcast %11 : i1 to vector<32x128xi1>
    %13 = vector.broadcast %12 : vector<32x128xi1> to vector<32x128xi1>
    %14 = arith.xori %10, %13 : vector<32x128xi1>
    %15 = arith.andi %14, %8 : vector<32x128xi1>
    %16 = vector.broadcast %4 : i32 to vector<32x128xi32>
    %17 = arith.addi %6, %16 : vector<32x128xi32>
    %18 = arith.select %15, %17, %6 : vector<32x128xi1>, vector<32x128xi32>
    %cst = arith.constant 0.000000e+00 : bf16
    %19 = vector.broadcast %cst : bf16 to vector<1x128xbf16>
    %cst_4 = arith.constant 0.000000e+00 : bf16
    %20 = vector.broadcast %cst_4 : bf16 to vector<32x128xbf16>
    %c0_i32_5 = arith.constant 0 : i32
    %21 = vector.broadcast %c0_i32_5 : i32 to vector<32x128xi32>
    %22 = arith.cmpi ne, %18, %21 : vector<32x128xi32>
    %23 = vector.extract_strided_slice %1 {offsets = [0, 0], sizes = [31, 128], strides = [1, 1]} : vector<32x128xbf16> to vector<31x128xbf16>
    %24 = tpu.concatenate %19, %23 in 0 : vector<1x128xbf16>, vector<31x128xbf16> -> vector<32x128xbf16>
    %25 = arith.select %22, %24, %20 : vector<32x128xi1>, vector<32x128xbf16>
    %c15_i32 = arith.constant 15 : i32
    %26 = vector.broadcast %c15_i32 : i32 to vector<32x128xi32>
    %27 = arith.cmpi ne, %18, %26 : vector<32x128xi32>
    %28 = vector.extract_strided_slice %1 {offsets = [1, 0], sizes = [31, 128], strides = [1, 1]} : vector<32x128xbf16> to vector<31x128xbf16>
    %29 = tpu.concatenate %28, %19 in 0 : vector<31x128xbf16>, vector<1x128xbf16> -> vector<32x128xbf16>
    %30 = arith.select %27, %29, %20 : vector<32x128xi1>, vector<32x128xbf16>
    %31 = tpu.concatenate %25, %1, %30 in 1 : vector<32x128xbf16>, vector<32x128xbf16>, vector<32x128xbf16> -> vector<32x384xbf16>
    %c0_6 = arith.constant 0 : index
    %c0_7 = arith.constant 0 : index
    %32 = vector.load %arg2[%c0_6, %c0_7] : memref<384x128xbf16, #tpu.memory_space<vmem>>, vector<384x128xbf16>
    %cst_8 = arith.constant dense<0.000000e+00> : vector<32x128xf32>
    %33 = tpu.matmul %31, %32, %cst_8 {dimension_numbers = #tpu.dot_dimension_numbers<[1], [0], [0], [1], [0, 0, 1, 1], [], []>} : vector<32x384xbf16>, vector<384x128xbf16>, vector<32x128xf32> -> vector<32x128xf32>
    %c0_9 = arith.constant 0 : index
    %c0_10 = arith.constant 0 : index
    %34 = vector.load %arg3[%c0_9, %c0_10] : memref<1x128xf32, #tpu.memory_space<vmem>>, vector<1x128xf32>
    %35 = vector.broadcast %34 : vector<1x128xf32> to vector<32x128xf32>
    %36 = arith.mulf %33, %35 : vector<32x128xf32>
    %c0_11 = arith.constant 0 : index
    %c0_12 = arith.constant 0 : index
    %37 = vector.load %arg4[%c0_11, %c0_12] : memref<1x128xf32, #tpu.memory_space<vmem>>, vector<1x128xf32>
    %38 = vector.broadcast %37 : vector<1x128xf32> to vector<32x128xf32>
    %39 = arith.addf %36, %38 : vector<32x128xf32>
    %cst_13 = arith.constant 0.000000e+00 : f32
    %40 = vector.broadcast %cst_13 : f32 to vector<32x128xf32>
    %41 = arith.cmpf ogt, %39, %40 : vector<32x128xf32>
    %cst_14 = arith.constant 0.00999999977 : f32
    %42 = vector.broadcast %cst_14 : f32 to vector<32x128xf32>
    %43 = arith.mulf %42, %39 : vector<32x128xf32>
    %44 = arith.select %41, %39, %43 : vector<32x128xi1>, vector<32x128xf32>
    %45 = arith.truncf %44 : vector<32x128xf32> to vector<32x128xbf16>
    %46 = tpu.iota {dimensions = array<i32: 0>} : vector<32x128xi32>
    %c16_i32_15 = arith.constant 16 : i32
    %c0_i32_16 = arith.constant 0 : i32
    %47 = arith.cmpi eq, %c16_i32_15, %c0_i32_16 : i32
    %c1_i32_17 = arith.constant 1 : i32
    %48 = arith.select %47, %c1_i32_17, %c16_i32_15 : i32
    %49 = vector.broadcast %48 : i32 to vector<32x128xi32>
    %50 = arith.remsi %46, %49 : vector<32x128xi32>
    %c0_i32_18 = arith.constant 0 : i32
    %51 = vector.broadcast %c0_i32_18 : i32 to vector<32x128xi32>
    %52 = arith.cmpi ne, %50, %51 : vector<32x128xi32>
    %c0_i32_19 = arith.constant 0 : i32
    %53 = vector.broadcast %c0_i32_19 : i32 to vector<32x128xi32>
    %54 = arith.cmpi slt, %50, %53 : vector<32x128xi32>
    %c0_i32_20 = arith.constant 0 : i32
    %55 = arith.cmpi slt, %48, %c0_i32_20 : i32
    %56 = vector.broadcast %55 : i1 to vector<32x128xi1>
    %57 = vector.broadcast %56 : vector<32x128xi1> to vector<32x128xi1>
    %58 = arith.xori %54, %57 : vector<32x128xi1>
    %59 = arith.andi %58, %52 : vector<32x128xi1>
    %60 = vector.broadcast %48 : i32 to vector<32x128xi32>
    %61 = arith.addi %50, %60 : vector<32x128xi32>
    %62 = arith.select %59, %61, %50 : vector<32x128xi1>, vector<32x128xi32>
    %cst_21 = arith.constant 0.000000e+00 : bf16
    %63 = vector.broadcast %cst_21 : bf16 to vector<1x128xbf16>
    %cst_22 = arith.constant 0.000000e+00 : bf16
    %64 = vector.broadcast %cst_22 : bf16 to vector<32x128xbf16>
    %c0_i32_23 = arith.constant 0 : i32
    %65 = vector.broadcast %c0_i32_23 : i32 to vector<32x128xi32>
    %66 = arith.cmpi ne, %62, %65 : vector<32x128xi32>
    %67 = vector.extract_strided_slice %45 {offsets = [0, 0], sizes = [31, 128], strides = [1, 1]} : vector<32x128xbf16> to vector<31x128xbf16>
    %68 = tpu.concatenate %63, %67 in 0 : vector<1x128xbf16>, vector<31x128xbf16> -> vector<32x128xbf16>
    %69 = arith.select %66, %68, %64 : vector<32x128xi1>, vector<32x128xbf16>
    %c15_i32_24 = arith.constant 15 : i32
    %70 = vector.broadcast %c15_i32_24 : i32 to vector<32x128xi32>
    %71 = arith.cmpi ne, %62, %70 : vector<32x128xi32>
    %72 = vector.extract_strided_slice %45 {offsets = [1, 0], sizes = [31, 128], strides = [1, 1]} : vector<32x128xbf16> to vector<31x128xbf16>
    %73 = tpu.concatenate %72, %63 in 0 : vector<31x128xbf16>, vector<1x128xbf16> -> vector<32x128xbf16>
    %74 = arith.select %71, %73, %64 : vector<32x128xi1>, vector<32x128xbf16>
    %75 = tpu.concatenate %69, %45, %74 in 1 : vector<32x128xbf16>, vector<32x128xbf16>, vector<32x128xbf16> -> vector<32x384xbf16>
    %c0_25 = arith.constant 0 : index
    %c0_26 = arith.constant 0 : index
    %76 = vector.load %arg5[%c0_25, %c0_26] : memref<384x256xbf16, #tpu.memory_space<vmem>>, vector<384x256xbf16>
    %cst_27 = arith.constant dense<0.000000e+00> : vector<32x256xf32>
    %77 = tpu.matmul %75, %76, %cst_27 {dimension_numbers = #tpu.dot_dimension_numbers<[1], [0], [0], [1], [0, 0, 1, 1], [], []>} : vector<32x384xbf16>, vector<384x256xbf16>, vector<32x256xf32> -> vector<32x256xf32>
    %c0_28 = arith.constant 0 : index
    %c0_29 = arith.constant 0 : index
    %78 = vector.load %arg6[%c0_28, %c0_29] : memref<1x256xf32, #tpu.memory_space<vmem>>, vector<1x256xf32>
    %79 = vector.broadcast %78 : vector<1x256xf32> to vector<32x256xf32>
    %80 = arith.mulf %77, %79 : vector<32x256xf32>
    %c0_30 = arith.constant 0 : index
    %c0_31 = arith.constant 0 : index
    %81 = vector.load %arg7[%c0_30, %c0_31] : memref<1x256xf32, #tpu.memory_space<vmem>>, vector<1x256xf32>
    %82 = vector.broadcast %81 : vector<1x256xf32> to vector<32x256xf32>
    %83 = arith.addf %80, %82 : vector<32x256xf32>
    %c0_32 = arith.constant 0 : index
    %c0_33 = arith.constant 0 : index
    %84 = vector.load %arg8[%c0_32, %c0_33] : memref<256x16xf32, #tpu.memory_space<vmem>>, vector<256x16xf32>
    %cst_34 = arith.constant dense<0.000000e+00> : vector<32x16xf32>
    %85 = tpu.matmul %83, %84, %cst_34 {dimension_numbers = #tpu.dot_dimension_numbers<[1], [0], [0], [1], [0, 0, 1, 1], [], []>} : vector<32x256xf32>, vector<256x16xf32>, vector<32x16xf32> -> vector<32x16xf32>
    %c0_35 = arith.constant 0 : index
    %c0_36 = arith.constant 0 : index
    %86 = vector.load %arg9[%c0_35, %c0_36] : memref<16x2xf32, #tpu.memory_space<vmem>>, vector<16x2xf32>
    %cst_37 = arith.constant dense<0.000000e+00> : vector<32x2xf32>
    %87 = tpu.matmul %85, %86, %cst_37 {dimension_numbers = #tpu.dot_dimension_numbers<[1], [0], [0], [1], [0, 0, 1, 1], [], []>} : vector<32x16xf32>, vector<16x2xf32>, vector<32x2xf32> -> vector<32x2xf32>
    %c0_38 = arith.constant 0 : index
    %c0_39 = arith.constant 0 : index
    %88 = vector.load %arg10[%c0_38, %c0_39] : memref<1x2xf32, #tpu.memory_space<vmem>>, vector<1x2xf32>
    %89 = vector.broadcast %88 : vector<1x2xf32> to vector<32x2xf32>
    %90 = arith.mulf %87, %89 : vector<32x2xf32>
    %c0_40 = arith.constant 0 : index
    %c0_41 = arith.constant 0 : index
    %91 = vector.load %arg11[%c0_40, %c0_41] : memref<1x2xf32, #tpu.memory_space<vmem>>, vector<1x2xf32>
    %92 = vector.broadcast %91 : vector<1x2xf32> to vector<32x2xf32>
    %93 = arith.addf %90, %92 : vector<32x2xf32>
    %cst_42 = arith.constant 3.000000e+00 : f32
    %94 = vector.broadcast %cst_42 : f32 to vector<32x2xf32>
    %95 = arith.addf %93, %94 : vector<32x2xf32>
    %cst_43 = arith.constant 0.000000e+00 : f32
    %cst_44 = arith.constant 6.000000e+00 : f32
    %96 = vector.broadcast %cst_43 : f32 to vector<32x2xf32>
    %97 = arith.maximumf %96, %95 : vector<32x2xf32>
    %98 = vector.broadcast %cst_44 : f32 to vector<32x2xf32>
    %99 = arith.minimumf %98, %97 : vector<32x2xf32>
    %100 = arith.mulf %93, %99 : vector<32x2xf32>
    %cst_45 = arith.constant 0.166666672 : f32
    %101 = vector.broadcast %cst_45 : f32 to vector<32x2xf32>
    %102 = arith.mulf %100, %101 : vector<32x2xf32>
    %c0_46 = arith.constant 0 : index
    %c0_47 = arith.constant 0 : index
    %103 = vector.load %arg12[%c0_46, %c0_47] : memref<2x256xf32, #tpu.memory_space<vmem>>, vector<2x256xf32>
    %cst_48 = arith.constant dense<0.000000e+00> : vector<32x256xf32>
    %104 = tpu.matmul %102, %103, %cst_48 {dimension_numbers = #tpu.dot_dimension_numbers<[1], [0], [0], [1], [0, 0, 1, 1], [], []>} : vector<32x2xf32>, vector<2x256xf32>, vector<32x256xf32> -> vector<32x256xf32>
    %105 = arith.negf %104 : vector<32x256xf32>
    %106 = math.exp %105 : vector<32x256xf32>
    %cst_49 = arith.constant 1.000000e+00 : f32
    %107 = vector.broadcast %cst_49 : f32 to vector<32x256xf32>
    %108 = arith.addf %107, %106 : vector<32x256xf32>
    %109 = arith.divf %107, %108 : vector<32x256xf32>
    %c0_50 = arith.constant 0 : index
    %c0_51 = arith.constant 0 : index
    %110 = vector.load %arg13[%c0_50, %c0_51] : memref<2x32xf32, #tpu.memory_space<vmem>>, vector<2x32xf32>
    %cst_52 = arith.constant dense<0.000000e+00> : vector<2x256xf32>
    %111 = tpu.matmul %110, %83, %cst_52 {dimension_numbers = #tpu.dot_dimension_numbers<[1], [0], [0], [1], [0, 0, 1, 1], [], []>} : vector<2x32xf32>, vector<32x256xf32>, vector<2x256xf32> -> vector<2x256xf32>
    %c0_53 = arith.constant 0 : index
    %c0_54 = arith.constant 0 : index
    %112 = vector.load %arg14[%c0_53, %c0_54] : memref<256x32xf32, #tpu.memory_space<vmem>>, vector<256x32xf32>
    %cst_55 = arith.constant dense<0.000000e+00> : vector<2x32xf32>
    %113 = tpu.matmul %111, %112, %cst_55 {dimension_numbers = #tpu.dot_dimension_numbers<[1], [0], [0], [1], [0, 0, 1, 1], [], []>} : vector<2x256xf32>, vector<256x32xf32>, vector<2x32xf32> -> vector<2x32xf32>
    %c0_56 = arith.constant 0 : index
    %c0_57 = arith.constant 0 : index
    %114 = vector.load %arg15[%c0_56, %c0_57] : memref<1x32xf32, #tpu.memory_space<vmem>>, vector<1x32xf32>
    %115 = vector.broadcast %114 : vector<1x32xf32> to vector<2x32xf32>
    %116 = arith.mulf %113, %115 : vector<2x32xf32>
    %c0_58 = arith.constant 0 : index
    %c0_59 = arith.constant 0 : index
    %117 = vector.load %arg16[%c0_58, %c0_59] : memref<1x32xf32, #tpu.memory_space<vmem>>, vector<1x32xf32>
    %118 = vector.broadcast %117 : vector<1x32xf32> to vector<2x32xf32>
    %119 = arith.addf %116, %118 : vector<2x32xf32>
    %cst_60 = arith.constant 3.000000e+00 : f32
    %120 = vector.broadcast %cst_60 : f32 to vector<2x32xf32>
    %121 = arith.addf %119, %120 : vector<2x32xf32>
    %cst_61 = arith.constant 0.000000e+00 : f32
    %cst_62 = arith.constant 6.000000e+00 : f32
    %122 = vector.broadcast %cst_61 : f32 to vector<2x32xf32>
    %123 = arith.maximumf %122, %121 : vector<2x32xf32>
    %124 = vector.broadcast %cst_62 : f32 to vector<2x32xf32>
    %125 = arith.minimumf %124, %123 : vector<2x32xf32>
    %126 = arith.mulf %119, %125 : vector<2x32xf32>
    %cst_63 = arith.constant 0.166666672 : f32
    %127 = vector.broadcast %cst_63 : f32 to vector<2x32xf32>
    %128 = arith.mulf %126, %127 : vector<2x32xf32>
    %c0_64 = arith.constant 0 : index
    %c0_65 = arith.constant 0 : index
    %129 = vector.load %arg17[%c0_64, %c0_65] : memref<32x256xf32, #tpu.memory_space<vmem>>, vector<32x256xf32>
    %cst_66 = arith.constant dense<0.000000e+00> : vector<2x256xf32>
    %130 = tpu.matmul %128, %129, %cst_66 {dimension_numbers = #tpu.dot_dimension_numbers<[1], [0], [0], [1], [0, 0, 1, 1], [], []>} : vector<2x32xf32>, vector<32x256xf32>, vector<2x256xf32> -> vector<2x256xf32>
    %131 = arith.negf %130 : vector<2x256xf32>
    %132 = math.exp %131 : vector<2x256xf32>
    %cst_67 = arith.constant 1.000000e+00 : f32
    %133 = vector.broadcast %cst_67 : f32 to vector<2x256xf32>
    %134 = arith.addf %133, %132 : vector<2x256xf32>
    %135 = arith.divf %133, %134 : vector<2x256xf32>
    %c0_68 = arith.constant 0 : index
    %c0_69 = arith.constant 0 : index
    %136 = vector.load %arg18[%c0_68, %c0_69] : memref<32x2xf32, #tpu.memory_space<vmem>>, vector<32x2xf32>
    %cst_70 = arith.constant dense<0.000000e+00> : vector<32x256xf32>
    %137 = tpu.matmul %136, %135, %cst_70 {dimension_numbers = #tpu.dot_dimension_numbers<[1], [0], [0], [1], [0, 0, 1, 1], [], []>} : vector<32x2xf32>, vector<2x256xf32>, vector<32x256xf32> -> vector<32x256xf32>
    %c0_71 = arith.constant 0 : index
    %c0_72 = arith.constant 0 : index
    %138 = vector.load %arg19[%c0_71, %c0_72] : memref<128x256xbf16, #tpu.memory_space<vmem>>, vector<128x256xbf16>
    %cst_73 = arith.constant dense<0.000000e+00> : vector<32x256xf32>
    %139 = tpu.matmul %1, %138, %cst_73 {dimension_numbers = #tpu.dot_dimension_numbers<[1], [0], [0], [1], [0, 0, 1, 1], [], []>} : vector<32x128xbf16>, vector<128x256xbf16>, vector<32x256xf32> -> vector<32x256xf32>
    %c0_74 = arith.constant 0 : index
    %c0_75 = arith.constant 0 : index
    %140 = vector.load %arg20[%c0_74, %c0_75] : memref<1x256xf32, #tpu.memory_space<vmem>>, vector<1x256xf32>
    %141 = vector.broadcast %140 : vector<1x256xf32> to vector<32x256xf32>
    %142 = arith.mulf %139, %141 : vector<32x256xf32>
    %c0_76 = arith.constant 0 : index
    %c0_77 = arith.constant 0 : index
    %143 = vector.load %arg21[%c0_76, %c0_77] : memref<1x256xf32, #tpu.memory_space<vmem>>, vector<1x256xf32>
    %144 = vector.broadcast %143 : vector<1x256xf32> to vector<32x256xf32>
    %145 = arith.addf %142, %144 : vector<32x256xf32>
    %146 = arith.mulf %83, %109 : vector<32x256xf32>
    %147 = arith.mulf %146, %137 : vector<32x256xf32>
    %148 = arith.addf %147, %145 : vector<32x256xf32>
    %cst_78 = arith.constant 0.000000e+00 : f32
    %149 = vector.broadcast %cst_78 : f32 to vector<32x256xf32>
    %150 = arith.cmpf ogt, %148, %149 : vector<32x256xf32>
    %cst_79 = arith.constant 0.00999999977 : f32
    %151 = vector.broadcast %cst_79 : f32 to vector<32x256xf32>
    %152 = arith.mulf %151, %148 : vector<32x256xf32>
    %153 = arith.select %150, %148, %152 : vector<32x256xi1>, vector<32x256xf32>
    %c0_80 = arith.constant 0 : index
    %c0_81 = arith.constant 0 : index
    %154 = vector.load %arg22[%c0_80, %c0_81] : memref<32x256xf32, #tpu.memory_space<vmem>>, vector<32x256xf32>
    tpu.vector_store %arg22[%c0_80, %c0_81], %153 {strides = array<i32>} : memref<32x256xf32, #tpu.memory_space<vmem>>, vector<32x256xf32>,
    return
  }
  func.func @transform_0(%arg0: i32) -> (i32, i32) {
    %c0_i32 = arith.constant 0 : i32
    %c0_i32_0 = arith.constant 0 : i32
    return %arg0, %c0_i32 : i32, i32
  }
  func.func @transform_1(%arg0: i32) -> (i32, i32) {
    %c0_i32 = arith.constant 0 : i32
    %c0_i32_0 = arith.constant 0 : i32
    %c0_i32_1 = arith.constant 0 : i32
    return %c0_i32, %c0_i32_0 : i32, i32
  }
  func.func @transform_2(%arg0: i32) -> (i32, i32) {
    %c0_i32 = arith.constant 0 : i32
    %c0_i32_0 = arith.constant 0 : i32
    %c0_i32_1 = arith.constant 0 : i32
    return %c0_i32, %c0_i32_0 : i32, i32
  }
  func.func @transform_3(%arg0: i32) -> (i32, i32) {
    %c0_i32 = arith.constant 0 : i32
    %c0_i32_0 = arith.constant 0 : i32
    %c0_i32_1 = arith.constant 0 : i32
    return %c0_i32, %c0_i32_0 : i32, i32
  }
  func.func @transform_4(%arg0: i32) -> (i32, i32) {
    %c0_i32 = arith.constant 0 : i32
    %c0_i32_0 = arith.constant 0 : i32
    %c0_i32_1 = arith.constant 0 : i32
    return %c0_i32, %c0_i32_0 : i32, i32
  }
  func.func @transform_5(%arg0: i32) -> (i32, i32) {
    %c0_i32 = arith.constant 0 : i32
    %c0_i32_0 = arith.constant 0 : i32
    %c0_i32_1 = arith.constant 0 : i32
    return %c0_i32, %c0_i32_0 : i32, i32
  }
  func.func @transform_6(%arg0: i32) -> (i32, i32) {
    %c0_i32 = arith.constant 0 : i32
    %c0_i32_0 = arith.constant 0 : i32
    %c0_i32_1 = arith.constant 0 : i32
    return %c0_i32, %c0_i32_0 : i32, i32
  }
  func.func @transform_7(%arg0: i32) -> (i32, i32) {
    %c0_i32 = arith.constant 0 : i32
    %c0_i32_0 = arith.constant 0 : i32
    %c0_i32_1 = arith.constant 0 : i32
    return %c0_i32, %c0_i32_0 : i32, i32
  }
  func.func @transform_8(%arg0: i32) -> (i32, i32) {
    %c0_i32 = arith.constant 0 : i32
    %c0_i32_0 = arith.constant 0 : i32
    %c0_i32_1 = arith.constant 0 : i32
    return %c0_i32, %c0_i32_0 : i32, i32
  }
  func.func @transform_9(%arg0: i32) -> (i32, i32) {
    %c0_i32 = arith.constant 0 : i32
    %c0_i32_0 = arith.constant 0 : i32
    %c0_i32_1 = arith.constant 0 : i32
    return %c0_i32, %c0_i32_0 : i32, i32
  }
  func.func @transform_10(%arg0: i32) -> (i32, i32) {
    %c0_i32 = arith.constant 0 : i32
    %c0_i32_0 = arith.constant 0 : i32
    %c0_i32_1 = arith.constant 0 : i32
    return %c0_i32, %c0_i32_0 : i32, i32
  }
  func.func @transform_11(%arg0: i32) -> (i32, i32) {
    %c0_i32 = arith.constant 0 : i32
    %c0_i32_0 = arith.constant 0 : i32
    %c0_i32_1 = arith.constant 0 : i32
    return %c0_i32, %c0_i32_0 : i32, i32
  }
  func.func @transform_12(%arg0: i32) -> (i32, i32) {
    %c0_i32 = arith.constant 0 : i32
    %c0_i32_0 = arith.constant 0 : i32
    %c0_i32_1 = arith.constant 0 : i32
    return %c0_i32, %c0_i32_0 : i32, i32
  }
  func.func @transform_13(%arg0: i32) -> (i32, i32) {
    %c0_i32 = arith.constant 0 : i32
    %c0_i32_0 = arith.constant 0 : i32
    %c0_i32_1 = arith.constant 0 : i32
    return %c0_i32, %c0_i32_0 : i32, i32
  }
  func.func @transform_14(%arg0: i32) -> (i32, i32) {
    %c0_i32 = arith.constant 0 : i32
    %c0_i32_0 = arith.constant 0 : i32
    %c0_i32_1 = arith.constant 0 : i32
    return %c0_i32, %c0_i32_0 : i32, i32
  }
  func.func @transform_15(%arg0: i32) -> (i32, i32) {
    %c0_i32 = arith.constant 0 : i32
    %c0_i32_0 = arith.constant 0 : i32
    %c0_i32_1 = arith.constant 0 : i32
    return %c0_i32, %c0_i32_0 : i32, i32
  }
  func.func @transform_16(%arg0: i32) -> (i32, i32) {
    %c0_i32 = arith.constant 0 : i32
    %c0_i32_0 = arith.constant 0 : i32
    %c0_i32_1 = arith.constant 0 : i32
    return %c0_i32, %c0_i32_0 : i32, i32
  }
  func.func @transform_17(%arg0: i32) -> (i32, i32) {
    %c0_i32 = arith.constant 0 : i32
    %c0_i32_0 = arith.constant 0 : i32
    %c0_i32_1 = arith.constant 0 : i32
    return %c0_i32, %c0_i32_0 : i32, i32
  }
  func.func @transform_18(%arg0: i32) -> (i32, i32) {
    %c0_i32 = arith.constant 0 : i32
    %c0_i32_0 = arith.constant 0 : i32
    %c0_i32_1 = arith.constant 0 : i32
    return %c0_i32, %c0_i32_0 : i32, i32
  }
  func.func @transform_19(%arg0: i32) -> (i32, i32) {
    %c0_i32 = arith.constant 0 : i32
    %c0_i32_0 = arith.constant 0 : i32
    %c0_i32_1 = arith.constant 0 : i32
    return %c0_i32, %c0_i32_0 : i32, i32
  }
  func.func @transform_20(%arg0: i32) -> (i32, i32) {
    %c0_i32 = arith.constant 0 : i32
    %c0_i32_0 = arith.constant 0 : i32
    %c0_i32_1 = arith.constant 0 : i32
    return %c0_i32, %c0_i32_0 : i32, i32
  }
  func.func @transform_21(%arg0: i32) -> (i32, i32) {
    %c0_i32 = arith.constant 0 : i32
    %c0_i32_0 = arith.constant 0 : i32
    return %arg0, %c0_i32 : i32, i32
  }
}

</mosaic_0001>

<llo_original>
// kernel: tpu_custom_call.1
$region0: #{tpu_custom_call.1}
  #allocation0 [shape = 'u32[]', space=smem, size = 0x4, offset = 0x4, fixed_abs, tag = 'smem constant byte address 0x4 - core index']
  #allocation1 [shape = 'u32[144,128]{1,0:T(1,128)}', space=vmem, size = 0x12000, scoped, tag = 'internal scratch']
  %s0 = inlined_call_operand.hbm [shape: f32[32,128], index: 0, kind: input, shape index: {}]
  %s1 = inlined_call_operand.vmem [shape: bf16[384,128], index: 1, kind: input, shape index: {}]
  %s2 = inlined_call_operand.vmem [shape: f32[1,128], index: 2, kind: input, shape index: {}]
  %s3 = inlined_call_operand.hbm [shape: f32[1,128], index: 3, kind: input, shape index: {}]
  %s4 = inlined_call_operand.vmem [shape: bf16[384,256], index: 4, kind: input, shape index: {}]
  %s5 = inlined_call_operand.hbm [shape: f32[1,256], index: 5, kind: input, shape index: {}]
  %s6 = inlined_call_operand.hbm [shape: f32[1,256], index: 6, kind: input, shape index: {}]
  %s7 = inlined_call_operand.vmem [shape: f32[256,16], index: 7, kind: input, shape index: {}]
  %s8 = inlined_call_operand.vmem [shape: f32[16,2], index: 8, kind: input, shape index: {}]
  %s9 = inlined_call_operand.hbm [shape: f32[1,2], index: 9, kind: input, shape index: {}]
  %s10 = inlined_call_operand.hbm [shape: f32[1,2], index: 10, kind: input, shape index: {}]
  %s11 = inlined_call_operand.hbm [shape: f32[2,256], index: 11, kind: input, shape index: {}]
  %s12 = inlined_call_operand.hbm [shape: f32[2,32], index: 12, kind: input, shape index: {}]
  %s13 = inlined_call_operand.vmem [shape: f32[256,32], index: 13, kind: input, shape index: {}]
  %s14 = inlined_call_operand.vmem [shape: f32[1,32], index: 14, kind: input, shape index: {}]
  %s15 = inlined_call_operand.vmem [shape: f32[1,32], index: 15, kind: input, shape index: {}]
  %s16 = inlined_call_operand.hbm [shape: f32[32,256], index: 16, kind: input, shape index: {}]
  %s17 = inlined_call_operand.vmem [shape: f32[32,2], index: 17, kind: input, shape index: {}]
  %s18 = inlined_call_operand.vmem [shape: bf16[128,256], index: 18, kind: input, shape index: {}]
  %s19 = inlined_call_operand.vmem [shape: f32[1,256], index: 19, kind: input, shape index: {}]
  %s20 = inlined_call_operand.vmem [shape: f32[1,256], index: 20, kind: input, shape index: {}]
  %s21 = inlined_call_operand.hbm [shape: f32[32,256], index: 21, kind: output, shape index: {}]
  %s22 = sld [smem:[#allocation0]]
  $region130: #{tpu_custom_call.1} parent=0
    _
  %s24 = ssub.s32 1, %s22
  %s25 = scalar_select 0, %s24, %s22
  $region1: #{tpu_custom_call.1} parent=0
    #allocation2 [shape = 'u8[16384]{0}', space=vmem, size = 0x4000, scoped, tag = 'input window, operand 0, single buffered']
    #allocation3 [shape = 's32[1]{0}', space=sflag, size = 0x4, scoped, tag = 'scoped memory for tpu_custom_call.1']
    #allocation4 [shape = 's32[1]{0}', space=sflag, size = 0x4, scoped, tag = 'scoped memory for tpu_custom_call.1']
    #allocation5 [shape = 'u8[512]{0}', space=vmem, size = 0x400, scoped, tag = 'input window, operand 3, single buffered']
    #allocation6 [shape = 's32[1]{0}', space=sflag, size = 0x4, scoped, tag = 'scoped memory for tpu_custom_call.1']
    #allocation7 [shape = 'u8[1024]{0}', space=vmem, size = 0x400, scoped, tag = 'input window, operand 5, single buffered']
    #allocation8 [shape = 'u8[1024]{0}', space=vmem, size = 0x400, scoped, tag = 'input window, operand 6, single buffered']
    #allocation9 [shape = 's32[1]{0}', space=sflag, size = 0x4, scoped, tag = 'scoped memory for tpu_custom_call.1']
    #allocation10 [shape = 'u8[512]{0}', space=vmem, size = 0x400, scoped, tag = 'input window, operand 9, single buffered']
    #allocation11 [shape = 'u8[512]{0}', space=vmem, size = 0x400, scoped, tag = 'input window, operand 10, single buffered']
    #allocation12 [shape = 's32[1]{0}', space=sflag, size = 0x4, scoped, tag = 'scoped memory for tpu_custom_call.1']
    #allocation13 [shape = 'u8[2048]{0}', space=vmem, size = 0x800, scoped, tag = 'input window, operand 11, single buffered']
    #allocation14 [shape = 'u8[1024]{0}', space=vmem, size = 0x400, scoped, tag = 'input window, operand 12, single buffered']
    #allocation15 [shape = 's32[1]{0}', space=sflag, size = 0x4, scoped, tag = 'scoped memory for tpu_custom_call.1']
    #allocation16 [shape = 'u8[32768]{0}', space=vmem, size = 0x8000, scoped, tag = 'input window, operand 16, single buffered']
    #allocation17 [shape = 'u8[32768]{0}', space=vmem, size = 0x8000, scoped, tag = 'output window, operand 0, single buffered']
    %26 = vsyncpa [#allocation3], 0
    %27 = vsyncpa [#allocation6], 0
    %28 = vsyncpa [#allocation9], 0
    %29 = vsyncpa [#allocation12], 0
    %30 = vsyncpa [#allocation15], 0
    %31 = vsyncpa [#allocation4], 0
    // Predicated region
    $region2: #{tpu_custom_call.1} parent=1 // pred_check
      _
    $region3: #{tpu_custom_call.1} parent=1 // pred_check_branch
      %33 = sbr.rel (0) target = $region5
    $region4: #{tpu_custom_call.1} parent=1 // pred_region
      %s35 = ssub.s32 512, 512
      %36 = vsyncadd [#allocation3], %s35
      %s37 = sshll.u32 [#allocation2], 4
      %s38 = int_to_ptr.vmem [resolvable:$true] %s37
      %43 = dma.hbm_to_vmem [thread:$0]  %s0, 512, %s38, [#allocation3], 128, 128, 8
    $region5: #{tpu_custom_call.1} parent=1 // pred_fallthru
      _
    // Predicated region
    $region6: #{tpu_custom_call.1} parent=1 // pred_check
      _
    $region7: #{tpu_custom_call.1} parent=1 // pred_check_branch
      %45 = sbr.rel (0) target = $region9
    $region8: #{tpu_custom_call.1} parent=1 // pred_region
      _
    $region9: #{tpu_custom_call.1} parent=1 // pred_fallthru
      _
    // Predicated region
    $region10: #{tpu_custom_call.1} parent=1 // pred_check
      _
    $region11: #{tpu_custom_call.1} parent=1 // pred_check_branch
      %47 = sbr.rel (0) target = $region13
    $region12: #{tpu_custom_call.1} parent=1 // pred_region
      _
    $region13: #{tpu_custom_call.1} parent=1 // pred_fallthru
      _
    // Predicated region
    $region14: #{tpu_custom_call.1} parent=1 // pred_check
      _
    $region15: #{tpu_custom_call.1} parent=1 // pred_check_branch
      %49 = sbr.rel (0) target = $region17
    $region16: #{tpu_custom_call.1} parent=1 // pred_region
      %s51 = ssub.s32 16, 16
      %52 = vsyncadd [#allocation6], %s51
      %s54 = sshll.u32 [#allocation5], 4
      %s55 = int_to_ptr.vmem [resolvable:$true] %s54
      %57 = dma.hbm_to_vmem [thread:$0]  %s3, 16, %s55, [#allocation6]
    $region17: #{tpu_custom_call.1} parent=1 // pred_fallthru
      _
    // Predicated region
    $region18: #{tpu_custom_call.1} parent=1 // pred_check
      _
    $region19: #{tpu_custom_call.1} parent=1 // pred_check_branch
      %59 = sbr.rel (0) target = $region21
    $region20: #{tpu_custom_call.1} parent=1 // pred_region
      _
    $region21: #{tpu_custom_call.1} parent=1 // pred_fallthru
      _
    // Predicated region
    $region22: #{tpu_custom_call.1} parent=1 // pred_check
      _
    $region23: #{tpu_custom_call.1} parent=1 // pred_check_branch
      %61 = sbr.rel (0) target = $region25
    $region24: #{tpu_custom_call.1} parent=1 // pred_region
      %s63 = ssub.s32 32, 32
      %64 = vsyncadd [#allocation6], %s63
      %s66 = sshll.u32 [#allocation7], 4
      %s67 = int_to_ptr.vmem [resolvable:$true] %s66
      %69 = dma.hbm_to_vmem [thread:$0]  %s5, 32, %s67, [#allocation6]
    $region25: #{tpu_custom_call.1} parent=1 // pred_fallthru
      _
    // Predicated region
    $region26: #{tpu_custom_call.1} parent=1 // pred_check
      _
    $region27: #{tpu_custom_call.1} parent=1 // pred_check_branch
      %71 = sbr.rel (0) target = $region29
    $region28: #{tpu_custom_call.1} parent=1 // pred_region
      %s73 = ssub.s32 32, 32
      %74 = vsyncadd [#allocation9], %s73
      %s76 = sshll.u32 [#allocation8], 4
      %s77 = int_to_ptr.vmem [resolvable:$true] %s76
      %79 = dma.hbm_to_vmem [thread:$0]  %s6, 32, %s77, [#allocation9]
    $region29: #{tpu_custom_call.1} parent=1 // pred_fallthru
      _
    // Predicated region
    $region30: #{tpu_custom_call.1} parent=1 // pred_check
      _
    $region31: #{tpu_custom_call.1} parent=1 // pred_check_branch
      %81 = sbr.rel (0) target = $region33
    $region32: #{tpu_custom_call.1} parent=1 // pred_region
      _
    $region33: #{tpu_custom_call.1} parent=1 // pred_fallthru
      _
    // Predicated region
    $region34: #{tpu_custom_call.1} parent=1 // pred_check
      _
    $region35: #{tpu_custom_call.1} parent=1 // pred_check_branch
      %83 = sbr.rel (0) target = $region37
    $region36: #{tpu_custom_call.1} parent=1 // pred_region
      _
    $region37: #{tpu_custom_call.1} parent=1 // pred_fallthru
      _
    // Predicated region
    $region38: #{tpu_custom_call.1} parent=1 // pred_check
      _
    $region39: #{tpu_custom_call.1} parent=1 // pred_check_branch
      %85 = sbr.rel (0) target = $region41
    $region40: #{tpu_custom_call.1} parent=1 // pred_region
      %s87 = ssub.s32 16, 16
      %88 = vsyncadd [#allocation9], %s87
      %s90 = sshll.u32 [#allocation10], 4
      %s91 = int_to_ptr.vmem [resolvable:$true] %s90
      %93 = dma.hbm_to_vmem [thread:$0]  %s9, 16, %s91, [#allocation9]
    $region41: #{tpu_custom_call.1} parent=1 // pred_fallthru
      _
    // Predicated region
    $region42: #{tpu_custom_call.1} parent=1 // pred_check
      _
    $region43: #{tpu_custom_call.1} parent=1 // pred_check_branch
      %95 = sbr.rel (0) target = $region45
    $region44: #{tpu_custom_call.1} parent=1 // pred_region
      %s97 = ssub.s32 16, 16
      %98 = vsyncadd [#allocation12], %s97
      %s100 = sshll.u32 [#allocation11], 4
      %s101 = int_to_ptr.vmem [resolvable:$true] %s100
      %103 = dma.hbm_to_vmem [thread:$0]  %s10, 16, %s101, [#allocation12]
    $region45: #{tpu_custom_call.1} parent=1 // pred_fallthru
      _
    // Predicated region
    $region46: #{tpu_custom_call.1} parent=1 // pred_check
      _
    $region47: #{tpu_custom_call.1} parent=1 // pred_check_branch
      %105 = sbr.rel (0) target = $region49
    $region48: #{tpu_custom_call.1} parent=1 // pred_region
      %s107 = ssub.s32 64, 64
      %108 = vsyncadd [#allocation12], %s107
      %s110 = sshll.u32 [#allocation13], 4
      %s111 = int_to_ptr.vmem [resolvable:$true] %s110
      %113 = dma.hbm_to_vmem [thread:$0]  %s11, 64, %s111, [#allocation12]
    $region49: #{tpu_custom_call.1} parent=1 // pred_fallthru
      _
    // Predicated region
    $region50: #{tpu_custom_call.1} parent=1 // pred_check
      _
    $region51: #{tpu_custom_call.1} parent=1 // pred_check_branch
      %115 = sbr.rel (0) target = $region53
    $region52: #{tpu_custom_call.1} parent=1 // pred_region
      %s117 = ssub.s32 32, 32
      %118 = vsyncadd [#allocation15], %s117
      %s120 = sshll.u32 [#allocation14], 4
      %s121 = int_to_ptr.vmem [resolvable:$true] %s120
      %123 = dma.hbm_to_vmem [thread:$0]  %s12, 32, %s121, [#allocation15]
    $region53: #{tpu_custom_call.1} parent=1 // pred_fallthru
      _
    // Predicated region
    $region54: #{tpu_custom_call.1} parent=1 // pred_check
      _
    $region55: #{tpu_custom_call.1} parent=1 // pred_check_branch
      %125 = sbr.rel (0) target = $region57
    $region56: #{tpu_custom_call.1} parent=1 // pred_region
      _
    $region57: #{tpu_custom_call.1} parent=1 // pred_fallthru
      _
    // Predicated region
    $region58: #{tpu_custom_call.1} parent=1 // pred_check
      _
    $region59: #{tpu_custom_call.1} parent=1 // pred_check_branch
      %127 = sbr.rel (0) target = $region61
    $region60: #{tpu_custom_call.1} parent=1 // pred_region
      _
    $region61: #{tpu_custom_call.1} parent=1 // pred_fallthru
      _
    // Predicated region
    $region62: #{tpu_custom_call.1} parent=1 // pred_check
      _
    $region63: #{tpu_custom_call.1} parent=1 // pred_check_branch
      %129 = sbr.rel (0) target = $region65
    $region64: #{tpu_custom_call.1} parent=1 // pred_region
      _
    $region65: #{tpu_custom_call.1} parent=1 // pred_fallthru
      _
    // Predicated region
    $region66: #{tpu_custom_call.1} parent=1 // pred_check
      _
    $region67: #{tpu_custom_call.1} parent=1 // pred_check_branch
      %131 = sbr.rel (0) target = $region69
    $region68: #{tpu_custom_call.1} parent=1 // pred_region
      %s133 = ssub.s32 1024, 1024
      %134 = vsyncadd [#allocation15], %s133
      %s135 = sshll.u32 [#allocation16], 4
      %s136 = int_to_ptr.vmem [resolvable:$true] %s135
      %141 = dma.hbm_to_vmem [thread:$0]  %s16, 1024, %s136, [#allocation15], 256, 256, 16
    $region69: #{tpu_custom_call.1} parent=1 // pred_fallthru
      _
    // Predicated region
    $region70: #{tpu_custom_call.1} parent=1 // pred_check
      _
    $region71: #{tpu_custom_call.1} parent=1 // pred_check_branch
      %143 = sbr.rel (0) target = $region73
    $region72: #{tpu_custom_call.1} parent=1 // pred_region
      _
    $region73: #{tpu_custom_call.1} parent=1 // pred_fallthru
      _
    // Predicated region
    $region74: #{tpu_custom_call.1} parent=1 // pred_check
      _
    $region75: #{tpu_custom_call.1} parent=1 // pred_check_branch
      %145 = sbr.rel (0) target = $region77
    $region76: #{tpu_custom_call.1} parent=1 // pred_region
      _
    $region77: #{tpu_custom_call.1} parent=1 // pred_fallthru
      _
    // Predicated region
    $region78: #{tpu_custom_call.1} parent=1 // pred_check
      _
    $region79: #{tpu_custom_call.1} parent=1 // pred_check_branch
      %147 = sbr.rel (0) target = $region81
    $region80: #{tpu_custom_call.1} parent=1 // pred_region
      _
    $region81: #{tpu_custom_call.1} parent=1 // pred_fallthru
      _
    // Predicated region
    $region82: #{tpu_custom_call.1} parent=1 // pred_check
      _
    $region83: #{tpu_custom_call.1} parent=1 // pred_check_branch
      %149 = sbr.rel (0) target = $region85
    $region84: #{tpu_custom_call.1} parent=1 // pred_region
      _
    $region85: #{tpu_custom_call.1} parent=1 // pred_fallthru
      _
    // Predicated region
    $region86: #{tpu_custom_call.1} parent=1 // pred_check
      _
    $region87: #{tpu_custom_call.1} parent=1 // pred_check_branch
      %151 = sbr.rel (0) target = $region89
    $region88: #{tpu_custom_call.1} parent=1 // pred_region
      %152 = dma.done [#allocation3], 512
    $region89: #{tpu_custom_call.1} parent=1 // pred_fallthru
      _
    // Predicated region
    $region90: #{tpu_custom_call.1} parent=1 // pred_check
      _
    $region91: #{tpu_custom_call.1} parent=1 // pred_check_branch
      %154 = sbr.rel (0) target = $region93
    $region92: #{tpu_custom_call.1} parent=1 // pred_region
      %155 = dma.done [#allocation6], 16
    $region93: #{tpu_custom_call.1} parent=1 // pred_fallthru
      _
    // Predicated region
    $region94: #{tpu_custom_call.1} parent=1 // pred_check
      _
    $region95: #{tpu_custom_call.1} parent=1 // pred_check_branch
      %157 = sbr.rel (0) target = $region97
    $region96: #{tpu_custom_call.1} parent=1 // pred_region
      %158 = dma.done [#allocation6], 32
    $region97: #{tpu_custom_call.1} parent=1 // pred_fallthru
      _
    // Predicated region
    $region98: #{tpu_custom_call.1} parent=1 // pred_check
      _
    $region99: #{tpu_custom_call.1} parent=1 // pred_check_branch
      %160 = sbr.rel (0) target = $region101
    $region100: #{tpu_custom_call.1} parent=1 // pred_region
      %161 = dma.done [#allocation9], 32
    $region101: #{tpu_custom_call.1} parent=1 // pred_fallthru
      _
    // Predicated region
    $region102: #{tpu_custom_call.1} parent=1 // pred_check
      _
    $region103: #{tpu_custom_call.1} parent=1 // pred_check_branch
      %163 = sbr.rel (0) target = $region105
    $region104: #{tpu_custom_call.1} parent=1 // pred_region
      %164 = dma.done [#allocation9], 16
    $region105: #{tpu_custom_call.1} parent=1 // pred_fallthru
      _
    // Predicated region
    $region106: #{tpu_custom_call.1} parent=1 // pred_check
      _
    $region107: #{tpu_custom_call.1} parent=1 // pred_check_branch
      %166 = sbr.rel (0) target = $region109
    $region108: #{tpu_custom_call.1} parent=1 // pred_region
      %167 = dma.done [#allocation12], 16
    $region109: #{tpu_custom_call.1} parent=1 // pred_fallthru
      _
    // Predicated region
    $region110: #{tpu_custom_call.1} parent=1 // pred_check
      _
    $region111: #{tpu_custom_call.1} parent=1 // pred_check_branch
      %169 = sbr.rel (0) target = $region113
    $region112: #{tpu_custom_call.1} parent=1 // pred_region
      %170 = dma.done [#allocation12], 64
    $region113: #{tpu_custom_call.1} parent=1 // pred_fallthru
      _
    // Predicated region
    $region114: #{tpu_custom_call.1} parent=1 // pred_check
      _
    $region115: #{tpu_custom_call.1} parent=1 // pred_check_branch
      %172 = sbr.rel (0) target = $region117
    $region116: #{tpu_custom_call.1} parent=1 // pred_region
      %173 = dma.done [#allocation15], 32
    $region117: #{tpu_custom_call.1} parent=1 // pred_fallthru
      _
    // Predicated region
    $region118: #{tpu_custom_call.1} parent=1 // pred_check
      _
    $region119: #{tpu_custom_call.1} parent=1 // pred_check_branch
      %175 = sbr.rel (0) target = $region121
    $region120: #{tpu_custom_call.1} parent=1 // pred_region
      %176 = dma.done [#allocation15], 1024
    $region121: #{tpu_custom_call.1} parent=1 // pred_fallthru
      _
    %v180 = vld [vmem:[#allocation2] sm:$0xff]
    %v181 = vld [vmem:[#allocation2 + $0x8] sm:$0xff]
    %v182 = vld [vmem:[#allocation2 + $0x10] sm:$0xff]
    %v183 = vld [vmem:[#allocation2 + $0x18] sm:$0xff]
    %v184 = vpack.c.bf16 %v181, %v180
    %v185 = vpack.c.bf16 %v183, %v182
    %v186 = vlaneseq
    %v187 = vshrl.u32 %v186, 7
    %v188 = vadd.s32 %v187, 8
    %v189 = vadd.s32 %v187, 16
    %v190 = vadd.s32 %v187, 24
    %vm191 = vcmp.lt.s32.totalorder %v187, 0
    %v192 = vsub.s32 0, %v187
    %v193 = vsel %vm191, %v192, %v187
    %v194 = vshrl.u32 %v193, 4
    %v195 = vand.u32 %v193, 15
    %v196 = vsub.s32 0, %v195
    %v197 = vsel %vm191, %v196, %v195
    %vm198 = vcmp.lt.s32.totalorder %v188, 0
    %v199 = vsub.s32 0, %v188
    %v200 = vsel %vm198, %v199, %v188
    %v201 = vshrl.u32 %v200, 4
    %v202 = vand.u32 %v200, 15
    %v203 = vsub.s32 0, %v202
    %v204 = vsel %vm198, %v203, %v202
    %vm205 = vcmp.lt.s32.totalorder %v189, 0
    %v206 = vsub.s32 0, %v189
    %v207 = vsel %vm205, %v206, %v189
    %v208 = vshrl.u32 %v207, 4
    %v209 = vand.u32 %v207, 15
    %v210 = vsub.s32 0, %v209
    %v211 = vsel %vm205, %v210, %v209
    %vm212 = vcmp.lt.s32.totalorder %v190, 0
    %v213 = vsub.s32 0, %v190
    %v214 = vsel %vm212, %v213, %v190
    %v215 = vshrl.u32 %v214, 4
    %v216 = vand.u32 %v214, 15
    %v217 = vsub.s32 0, %v216
    %v218 = vsel %vm212, %v217, %v216
    %vm219 = vcmp.ne.s32.totalorder %v197, 0
    %vm220 = vcmp.ne.s32.totalorder %v204, 0
    %vm221 = vcmp.ne.s32.totalorder %v211, 0
    %vm222 = vcmp.ne.s32.totalorder %v218, 0
    %vm223 = vcmp.lt.s32.totalorder %v197, 0
    %vm224 = vcmp.lt.s32.totalorder %v204, 0
    %vm225 = vcmp.lt.s32.totalorder %v211, 0
    %vm226 = vcmp.lt.s32.totalorder %v218, 0
    %vm227 = vmand %vm223, %vm219
    %vm228 = vmand %vm224, %vm220
    %vm229 = vmand %vm225, %vm221
    %vm230 = vmand %vm226, %vm222
    %v231 = vadd.s32 %v197, 16
    %v232 = vadd.s32 %v204, 16
    %v233 = vadd.s32 %v211, 16
    %v234 = vadd.s32 %v218, 16
    %v235 = vsel %vm227, %v231, %v197
    %v236 = vsel %vm228, %v232, %v204
    %v237 = vsel %vm229, %v233, %v211
    %v238 = vsel %vm230, %v234, %v218
    %vm239 = vcmp.ne.s32.totalorder %v235, 0
    %vm240 = vcmp.ne.s32.totalorder %v236, 0
    %vm241 = vcmp.ne.s32.totalorder %v237, 0
    %vm242 = vcmp.ne.s32.totalorder %v238, 0
    %vm243 = vsmask.f32 256
    %v245 = vshrl.u32 %v184, 16
    %v247 = vrot.slane %v245, 7
    %v248 = vshll.u32 %v184, 16
    %v250 = vor.u32 %v247, %v248
    %v252 = vshrl.u32 %v185, 16
    %v254 = vrot.slane %v252, 7
    %v255 = vshll.u32 %v185, 16
    %v257 = vor.u32 %v254, %v255
    %v258 = vsel %vm243, %v247, %v257
    %vm261 = vcmask 1040384
    %vm262 = vmand %vm261, %vm243
    %v263 = vsel %vm262, 0, %v250
    %vm264 = vmpackc.low %vm239, %vm239
    %vm265 = vmpackc.low %vm240, %vm240
    %vm266 = vmpackc.low %vm241, %vm241
    %vm267 = vmpackc.low %vm242, %vm242
    %v268 = vsel %vm264, 65537, 0
    %v269 = vsel %vm265, 65537, 0
    %v270 = vsel %vm266, 65537, 0
    %v271 = vsel %vm267, 65537, 0
    %v272 = vunpack.c.l.b16 %v268
    %v273 = vunpack.c.l.b16 %v269
    %v274 = vunpack.c.l.b16 %v270
    %v275 = vunpack.c.l.b16 %v271
    %v276 = vpack.c.b16 %v273, %v272
    %v277 = vpack.c.b16 %v275, %v274
    %vm278 = vcmp.ne.s16.totalorder %v276, 0
    %vm279 = vcmp.ne.s16.totalorder %v277, 0
    %v280 = vsel %vm278, %v263, 0
    %v281 = vsel %vm279, %v258, 0
    %vm282 = vcmp.ne.s32.totalorder %v235, 15
    %vm283 = vcmp.ne.s32.totalorder %v236, 15
    %vm284 = vcmp.ne.s32.totalorder %v237, 15
    %vm285 = vcmp.ne.s32.totalorder %v238, 15
    %vm286 = vsmask.f32 7424
    %v287 = vrot.slane %v248, 1
    %v288 = vor.u32 %v245, %v287
    %v289 = vrot.slane %v255, 1
    %v290 = vsel %vm286, %v288, %v289
    %v291 = vor.u32 %v252, %v289
    %vm294 = vcmask 1047552
    %vm295 = vmand %vm294, %vm286
    %v296 = vsel %vm295, %v291, 0
    %vm297 = vmpackc.low %vm282, %vm282
    %vm298 = vmpackc.low %vm283, %vm283
    %vm299 = vmpackc.low %vm284, %vm284
    %vm300 = vmpackc.low %vm285, %vm285
    %v301 = vsel %vm297, 65537, 0
    %v302 = vsel %vm298, 65537, 0
    %v303 = vsel %vm299, 65537, 0
    %v304 = vsel %vm300, 65537, 0
    %v305 = vunpack.c.l.b16 %v301
    %v306 = vunpack.c.l.b16 %v302
    %v307 = vunpack.c.l.b16 %v303
    %v308 = vunpack.c.l.b16 %v304
    %v309 = vpack.c.b16 %v306, %v305
    %v310 = vpack.c.b16 %v308, %v307
    %vm311 = vcmp.ne.s16.totalorder %v309, 0
    %vm312 = vcmp.ne.s16.totalorder %v310, 0
    %v313 = vsel %vm311, %v290, 0
    %v314 = vsel %vm312, %v296, 0
    %v315 = vld [vmem:[%s1] sm:$0xf]
    %v316 = vld [vmem:[%s1 + $0x4] sm:$0xf]
    %v317 = vld [vmem:[%s1 + $0x8] sm:$0xf]
    %v318 = vld [vmem:[%s1 + $0xc] sm:$0xf]
    %v319 = vld [vmem:[%s1 + $0x10] sm:$0xf]
    %v320 = vld [vmem:[%s1 + $0x14] sm:$0xf]
    %v321 = vld [vmem:[%s1 + $0x18] sm:$0xf]
    %v322 = vld [vmem:[%s1 + $0x1c] sm:$0xf]
    %v323 = vld [vmem:[%s1 + $0x20] sm:$0xf]
    %v324 = vld [vmem:[%s1 + $0x24] sm:$0xf]
    %v325 = vld [vmem:[%s1 + $0x28] sm:$0xf]
    %v326 = vld [vmem:[%s1 + $0x2c] sm:$0xf]
    %v327 = vld [vmem:[%s1 + $0x30] sm:$0xf]
    %v328 = vld [vmem:[%s1 + $0x34] sm:$0xf]
    %v329 = vld [vmem:[%s1 + $0x38] sm:$0xf]
    %v330 = vld [vmem:[%s1 + $0x3c] sm:$0xf]
    %v331 = vld [vmem:[%s1 + $0x40] sm:$0xf]
    %v332 = vld [vmem:[%s1 + $0x44] sm:$0xf]
    %v333 = vld [vmem:[%s1 + $0x48] sm:$0xf]
    %v334 = vld [vmem:[%s1 + $0x4c] sm:$0xf]
    %v335 = vld [vmem:[%s1 + $0x50] sm:$0xf]
    %v336 = vld [vmem:[%s1 + $0x54] sm:$0xf]
    %v337 = vld [vmem:[%s1 + $0x58] sm:$0xf]
    %v338 = vld [vmem:[%s1 + $0x5c] sm:$0xf]
    %v339 = vld [vmem:[%s1 + $0x60] sm:$0xf]
    %v340 = vld [vmem:[%s1 + $0x64] sm:$0xf]
    %v341 = vld [vmem:[%s1 + $0x68] sm:$0xf]
    %v342 = vld [vmem:[%s1 + $0x6c] sm:$0xf]
    %v343 = vld [vmem:[%s1 + $0x70] sm:$0xf]
    %v344 = vld [vmem:[%s1 + $0x74] sm:$0xf]
    %v345 = vld [vmem:[%s1 + $0x78] sm:$0xf]
    %v346 = vld [vmem:[%s1 + $0x7c] sm:$0xf]
    %v347 = vld [vmem:[%s1 + $0x80] sm:$0xf]
    %v348 = vld [vmem:[%s1 + $0x84] sm:$0xf]
    %v349 = vld [vmem:[%s1 + $0x88] sm:$0xf]
    %v350 = vld [vmem:[%s1 + $0x8c] sm:$0xf]
    %v351 = vld [vmem:[%s1 + $0x90] sm:$0xf]
    %v352 = vld [vmem:[%s1 + $0x94] sm:$0xf]
    %v353 = vld [vmem:[%s1 + $0x98] sm:$0xf]
    %v354 = vld [vmem:[%s1 + $0x9c] sm:$0xf]
    %v355 = vld [vmem:[%s1 + $0xa0] sm:$0xf]
    %v356 = vld [vmem:[%s1 + $0xa4] sm:$0xf]
    %v357 = vld [vmem:[%s1 + $0xa8] sm:$0xf]
    %v358 = vld [vmem:[%s1 + $0xac] sm:$0xf]
    %v359 = vld [vmem:[%s1 + $0xb0] sm:$0xf]
    %v360 = vld [vmem:[%s1 + $0xb4] sm:$0xf]
    %v361 = vld [vmem:[%s1 + $0xb8] sm:$0xf]
    %v362 = vld [vmem:[%s1 + $0xbc] sm:$0xf]
    %v411 = vunpack.c.l.b16 %v315
    %v412 = vunpack.c.l.b16 %v316
    %v413 = vunpack.c.l.b16 %v317
    %v414 = vunpack.c.l.b16 %v318
    %v415 = vunpack.c.l.b16 %v319
    %v416 = vunpack.c.l.b16 %v320
    %v417 = vunpack.c.l.b16 %v321
    %v418 = vunpack.c.l.b16 %v322
    %v419 = vunpack.c.l.b16 %v323
    %v420 = vunpack.c.l.b16 %v324
    %v421 = vunpack.c.l.b16 %v325
    %v422 = vunpack.c.l.b16 %v326
    %v423 = vunpack.c.l.b16 %v327
    %v424 = vunpack.c.l.b16 %v328
    %v425 = vunpack.c.l.b16 %v329
    %v426 = vunpack.c.l.b16 %v330
    %v427 = vunpack.c.l.b16 %v331
    %v428 = vunpack.c.l.b16 %v332
    %v429 = vunpack.c.l.b16 %v333
    %v430 = vunpack.c.l.b16 %v334
    %v431 = vunpack.c.l.b16 %v335
    %v432 = vunpack.c.l.b16 %v336
    %v433 = vunpack.c.l.b16 %v337
    %v434 = vunpack.c.l.b16 %v338
    %v435 = vunpack.c.l.b16 %v339
    %v436 = vunpack.c.l.b16 %v340
    %v437 = vunpack.c.l.b16 %v341
    %v438 = vunpack.c.l.b16 %v342
    %v439 = vunpack.c.l.b16 %v343
    %v440 = vunpack.c.l.b16 %v344
    %v441 = vunpack.c.l.b16 %v345
    %v442 = vunpack.c.l.b16 %v346
    %v443 = vunpack.c.l.b16 %v347
    %v444 = vunpack.c.l.b16 %v348
    %v445 = vunpack.c.l.b16 %v349
    %v446 = vunpack.c.l.b16 %v350
    %v447 = vunpack.c.l.b16 %v351
    %v448 = vunpack.c.l.b16 %v352
    %v449 = vunpack.c.l.b16 %v353
    %v450 = vunpack.c.l.b16 %v354
    %v451 = vunpack.c.l.b16 %v355
    %v452 = vunpack.c.l.b16 %v356
    %v453 = vunpack.c.l.b16 %v357
    %v454 = vunpack.c.l.b16 %v358
    %v455 = vunpack.c.l.b16 %v359
    %v456 = vunpack.c.l.b16 %v360
    %v457 = vunpack.c.l.b16 %v361
    %v458 = vunpack.c.l.b16 %v362
    %v459 = vpack.c.b16 %v412, %v411
    %v460 = vpack.c.b16 %v414, %v413
    %v461 = vpack.c.b16 %v416, %v415
    %v462 = vpack.c.b16 %v418, %v417
    %v463 = vpack.c.b16 %v420, %v419
    %v464 = vpack.c.b16 %v422, %v421
    %v465 = vpack.c.b16 %v424, %v423
    %v466 = vpack.c.b16 %v426, %v425
    %v467 = vpack.c.b16 %v428, %v427
    %v468 = vpack.c.b16 %v430, %v429
    %v469 = vpack.c.b16 %v432, %v431
    %v470 = vpack.c.b16 %v434, %v433
    %v471 = vpack.c.b16 %v436, %v435
    %v472 = vpack.c.b16 %v438, %v437
    %v473 = vpack.c.b16 %v440, %v439
    %v474 = vpack.c.b16 %v442, %v441
    %v475 = vpack.c.b16 %v444, %v443
    %v476 = vpack.c.b16 %v446, %v445
    %v477 = vpack.c.b16 %v448, %v447
    %v478 = vpack.c.b16 %v450, %v449
    %v479 = vpack.c.b16 %v452, %v451
    %v480 = vpack.c.b16 %v454, %v453
    %v481 = vpack.c.b16 %v456, %v455
    %v482 = vpack.c.b16 %v458, %v457
    %507 = vmatprep.subr.bf16.mxu0 0
    %508 = vmatpush1.bf16.msra.mxu0 %v459
    %509 = vmatprep.subr.bf16.mxu0 0
    %510 = vmatpush1.bf16.msra.mxu0 %v460
    %511 = vmatprep.subr.bf16.mxu0 0
    %512 = vmatpush1.bf16.msra.mxu0 %v461
    %513 = vmatprep.subr.bf16.mxu0 0
    %514 = vmatpush1.bf16.msra.mxu0 %v462
    %515 = vmatprep.subr.bf16.mxu0 0
    %516 = vmatpush1.bf16.msra.mxu0 %v463
    %517 = vmatprep.subr.bf16.mxu0 0
    %518 = vmatpush1.bf16.msra.mxu0 %v464
    %519 = vmatprep.subr.bf16.mxu0 0
    %520 = vmatpush1.bf16.msra.mxu0 %v465
    %521 = vmatprep.subr.bf16.mxu0 0
    %522 = vmatpush1.bf16.msra.mxu0 %v466
    %523 = vmatprep.subr.bf16.mxu0 0
    %524 = vmatpush1.bf16.msra.mxu0 %v467
    %525 = vmatprep.subr.bf16.mxu0 0
    %526 = vmatpush1.bf16.msra.mxu0 %v468
    %527 = vmatprep.subr.bf16.mxu0 0
    %528 = vmatpush1.bf16.msra.mxu0 %v469
    %529 = vmatprep.subr.bf16.mxu0 0
    %530 = vmatpush1.bf16.msra.mxu0 %v470
    %531 = vmatprep.subr.bf16.mxu0 0
    %532 = vmatpush1.bf16.msra.mxu0 %v471
    %533 = vmatprep.subr.bf16.mxu0 0
    %534 = vmatpush1.bf16.msra.mxu0 %v472
    %535 = vmatprep.subr.bf16.mxu0 0
    %536 = vmatpush1.bf16.msra.mxu0 %v473
    %537 = vmatprep.subr.bf16.mxu0 0
    %538 = vmatpush1.bf16.msra.mxu0 %v474
    %539 = vmatprep.mubr.bf16.mxu0 %v184
    %540 = vmatmul.mubr.bf16.gmra.mrb[0].mxu0 %v280
    %v541 = vpop.f32.mrb[0].mxu0
    %v542 = vadd.f32 0.0, %v541
    %v543 = vpop.f32.mrb[0].mxu0
    %v544 = vpop.f32.mrb[0].mxu0
    %v545 = vadd.f32 0.0, %v544
    %v546 = vpop.f32.mrb[0].mxu0
    %547 = vmatprep.mubr.bf16.mxu0 %v185
    %548 = vmatmul.mubr.bf16.gmra.mrb[0].mxu0 %v281
    %v549 = vpop.f32.mrb[0].mxu0
    %v550 = vadd.f32 0.0, %v549
    %v551 = vpop.f32.mrb[0].mxu0
    %v552 = vpop.f32.mrb[0].mxu0
    %v553 = vadd.f32 0.0, %v552
    %v554 = vpop.f32.mrb[0].mxu0
    %555 = vdwg.mxu0
    %556 = vmatprep.subr.bf16.mxu0 0
    %557 = vmatpush1.bf16.msra.mxu0 %v475
    %558 = vmatprep.subr.bf16.mxu0 0
    %559 = vmatpush1.bf16.msra.mxu0 %v476
    %560 = vmatprep.subr.bf16.mxu0 0
    %561 = vmatpush1.bf16.msra.mxu0 %v477
    %562 = vmatprep.subr.bf16.mxu0 0
    %563 = vmatpush1.bf16.msra.mxu0 %v478
    %564 = vmatprep.subr.bf16.mxu0 0
    %565 = vmatpush1.bf16.msra.mxu0 %v479
    %566 = vmatprep.subr.bf16.mxu0 0
    %567 = vmatpush1.bf16.msra.mxu0 %v480
    %568 = vmatprep.subr.bf16.mxu0 0
    %569 = vmatpush1.bf16.msra.mxu0 %v481
    %570 = vmatprep.subr.bf16.mxu0 0
    %571 = vmatpush1.bf16.msra.mxu0 %v482
    %572 = vmatprep.subr.bf16.mxu0 0
    %573 = vmatpush1.bf16.msra.mxu0 0
    %574 = vmatprep.subr.bf16.mxu0 0
    %575 = vmatpush1.bf16.msra.mxu0 0
    %576 = vmatprep.subr.bf16.mxu0 0
    %577 = vmatpush1.bf16.msra.mxu0 0
    %578 = vmatprep.subr.bf16.mxu0 0
    %579 = vmatpush1.bf16.msra.mxu0 0
    %580 = vmatprep.subr.bf16.mxu0 0
    %581 = vmatpush1.bf16.msra.mxu0 0
    %582 = vmatprep.subr.bf16.mxu0 0
    %583 = vmatpush1.bf16.msra.mxu0 0
    %584 = vmatprep.subr.bf16.mxu0 0
    %585 = vmatpush1.bf16.msra.mxu0 0
    %586 = vmatprep.subr.bf16.mxu0 0
    %587 = vmatpush1.bf16.msra.mxu0 0
    %588 = vmatprep.mubr.bf16.mxu0 0
    %589 = vmatmul.mubr.bf16.gmra.mrb[0].mxu0 %v313
    %v590 = vpop.f32.mrb[0].mxu0
    %v591 = vadd.f32 %v542, %v590
    %v592 = vpop.f32.mrb[0].mxu0
    %v593 = vpop.f32.mrb[0].mxu0
    %v594 = vadd.f32 %v545, %v593
    %v595 = vpop.f32.mrb[0].mxu0
    %596 = vmatprep.mubr.bf16.mxu0 0
    %597 = vmatmul.mubr.bf16.gmra.mrb[0].mxu0 %v314
    %v598 = vpop.f32.mrb[0].mxu0
    %v599 = vadd.f32 %v550, %v598
    %v600 = vpop.f32.mrb[0].mxu0
    %v601 = vpop.f32.mrb[0].mxu0
    %v602 = vadd.f32 %v553, %v601
    %v603 = vpop.f32.mrb[0].mxu0
    %604 = vdwg.mxu0
    %v605 = vld [vmem:[%s2] sm:$0x1]
    %v607 = vlaneseq
    %v608 = vshrl.u32 %v607, 7
    %v609 = vsub.s32 0, %v608
    %v610 = vrot.slane %v605, %v609
    %v612 = vmul.f32 %v591, %v610
    %v613 = vmul.f32 %v594, %v610
    %v614 = vmul.f32 %v599, %v610
    %v615 = vmul.f32 %v602, %v610
    %v616 = vld [vmem:[#allocation5] sm:$0x1]
    %v618 = vlaneseq
    %v619 = vshrl.u32 %v618, 7
    %v620 = vsub.s32 0, %v619
    %v621 = vrot.slane %v616, %v620
    %v623 = vadd.f32 %v612, %v621
    %v624 = vadd.f32 %v613, %v621
    %v625 = vadd.f32 %v614, %v621
    %v626 = vadd.f32 %v615, %v621
    %vm627 = vcmp.gt.f32.partialorder %v623, 0.0
    %vm628 = vcmp.gt.f32.partialorder %v624, 0.0
    %vm629 = vcmp.gt.f32.partialorder %v625, 0.0
    %vm630 = vcmp.gt.f32.partialorder %v626, 0.0
    %v631 = vmul.f32 %v623, 0.01
    %v632 = vmul.f32 %v624, 0.01
    %v633 = vmul.f32 %v625, 0.01
    %v634 = vmul.f32 %v626, 0.01
    %v635 = vsel %vm627, %v623, %v631
    %v636 = vsel %vm628, %v624, %v632
    %v637 = vsel %vm629, %v625, %v633
    %v638 = vsel %vm630, %v626, %v634
    %v639 = vpack.c.bf16 %v636, %v635
    %v640 = vpack.c.bf16 %v638, %v637
    %v642 = vshrl.u32 %v639, 16
    %v644 = vrot.slane %v642, 7
    %v645 = vshll.u32 %v639, 16
    %v647 = vor.u32 %v644, %v645
    %v649 = vshrl.u32 %v640, 16
    %v651 = vrot.slane %v649, 7
    %v652 = vshll.u32 %v640, 16
    %v654 = vor.u32 %v651, %v652
    %v655 = vsel %vm243, %v644, %v654
    %v658 = vsel %vm262, 0, %v647
    %v659 = vsel %vm278, %v658, 0
    %v660 = vsel %vm279, %v655, 0
    %v661 = vrot.slane %v645, 1
    %v662 = vor.u32 %v642, %v661
    %v663 = vrot.slane %v652, 1
    %v664 = vsel %vm286, %v662, %v663
    %v665 = vor.u32 %v649, %v663
    %v668 = vsel %vm295, %v665, 0
    %v669 = vsel %vm311, %v664, 0
    %v670 = vsel %vm312, %v668, 0
    %v671 = vld [vmem:[%s4] sm:$0xff]
    %v672 = vld [vmem:[%s4 + $0x8] sm:$0xff]
    %v673 = vld [vmem:[%s4 + $0x10] sm:$0xff]
    %v674 = vld [vmem:[%s4 + $0x18] sm:$0xff]
    %v675 = vld [vmem:[%s4 + $0x20] sm:$0xff]
    %v676 = vld [vmem:[%s4 + $0x28] sm:$0xff]
    %v677 = vld [vmem:[%s4 + $0x30] sm:$0xff]
    %v678 = vld [vmem:[%s4 + $0x38] sm:$0xff]
    %v679 = vld [vmem:[%s4 + $0x40] sm:$0xff]
    %v680 = vld [vmem:[%s4 + $0x48] sm:$0xff]
    %v681 = vld [vmem:[%s4 + $0x50] sm:$0xff]
    %v682 = vld [vmem:[%s4 + $0x58] sm:$0xff]
    %v683 = vld [vmem:[%s4 + $0x60] sm:$0xff]
    %v684 = vld [vmem:[%s4 + $0x68] sm:$0xff]
    %v685 = vld [vmem:[%s4 + $0x70] sm:$0xff]
    %v686 = vld [vmem:[%s4 + $0x78] sm:$0xff]
    %v687 = vld [vmem:[%s4 + $0x80] sm:$0xff]
    %v688 = vld [vmem:[%s4 + $0x88] sm:$0xff]
    %v689 = vld [vmem:[%s4 + $0x90] sm:$0xff]
    %v690 = vld [vmem:[%s4 + $0x98] sm:$0xff]
    %v691 = vld [vmem:[%s4 + $0xa0] sm:$0xff]
    %v692 = vld [vmem:[%s4 + $0xa8] sm:$0xff]
    %v693 = vld [vmem:[%s4 + $0xb0] sm:$0xff]
    %v694 = vld [vmem:[%s4 + $0xb8] sm:$0xff]
    %v695 = vld [vmem:[%s4 + $0xc0] sm:$0xff]
    %v696 = vld [vmem:[%s4 + $0xc8] sm:$0xff]
    %v697 = vld [vmem:[%s4 + $0xd0] sm:$0xff]
    %v698 = vld [vmem:[%s4 + $0xd8] sm:$0xff]
    %v699 = vld [vmem:[%s4 + $0xe0] sm:$0xff]
    %v700 = vld [vmem:[%s4 + $0xe8] sm:$0xff]
    %v701 = vld [vmem:[%s4 + $0xf0] sm:$0xff]
    %v702 = vld [vmem:[%s4 + $0xf8] sm:$0xff]
    %v703 = vld [vmem:[%s4 + $0x100] sm:$0xff]
    %v704 = vld [vmem:[%s4 + $0x108] sm:$0xff]
    %v705 = vld [vmem:[%s4 + $0x110] sm:$0xff]
    %v706 = vld [vmem:[%s4 + $0x118] sm:$0xff]
    %v707 = vld [vmem:[%s4 + $0x120] sm:$0xff]
    %v708 = vld [vmem:[%s4 + $0x128] sm:$0xff]
    %v709 = vld [vmem:[%s4 + $0x130] sm:$0xff]
    %v710 = vld [vmem:[%s4 + $0x138] sm:$0xff]
    %v711 = vld [vmem:[%s4 + $0x140] sm:$0xff]
    %v712 = vld [vmem:[%s4 + $0x148] sm:$0xff]
    %v713 = vld [vmem:[%s4 + $0x150] sm:$0xff]
    %v714 = vld [vmem:[%s4 + $0x158] sm:$0xff]
    %v715 = vld [vmem:[%s4 + $0x160] sm:$0xff]
    %v716 = vld [vmem:[%s4 + $0x168] sm:$0xff]
    %v717 = vld [vmem:[%s4 + $0x170] sm:$0xff]
    %v718 = vld [vmem:[%s4 + $0x178] sm:$0xff]
    %v767 = vunpack.c.l.b16 %v671
    %v768 = vunpack.c.h.b16 %v671
    %v769 = vunpack.c.l.b16 %v672
    %v770 = vunpack.c.h.b16 %v672
    %v771 = vunpack.c.l.b16 %v673
    %v772 = vunpack.c.h.b16 %v673
    %v773 = vunpack.c.l.b16 %v674
    %v774 = vunpack.c.h.b16 %v674
    %v775 = vunpack.c.l.b16 %v675
    %v776 = vunpack.c.h.b16 %v675
    %v777 = vunpack.c.l.b16 %v676
    %v778 = vunpack.c.h.b16 %v676
    %v779 = vunpack.c.l.b16 %v677
    %v780 = vunpack.c.h.b16 %v677
    %v781 = vunpack.c.l.b16 %v678
    %v782 = vunpack.c.h.b16 %v678
    %v783 = vunpack.c.l.b16 %v679
    %v784 = vunpack.c.h.b16 %v679
    %v785 = vunpack.c.l.b16 %v680
    %v786 = vunpack.c.h.b16 %v680
    %v787 = vunpack.c.l.b16 %v681
    %v788 = vunpack.c.h.b16 %v681
    %v789 = vunpack.c.l.b16 %v682
    %v790 = vunpack.c.h.b16 %v682
    %v791 = vunpack.c.l.b16 %v683
    %v792 = vunpack.c.h.b16 %v683
    %v793 = vunpack.c.l.b16 %v684
    %v794 = vunpack.c.h.b16 %v684
    %v795 = vunpack.c.l.b16 %v685
    %v796 = vunpack.c.h.b16 %v685
    %v797 = vunpack.c.l.b16 %v686
    %v798 = vunpack.c.h.b16 %v686
    %v799 = vunpack.c.l.b16 %v687
    %v800 = vunpack.c.h.b16 %v687
    %v801 = vunpack.c.l.b16 %v688
    %v802 = vunpack.c.h.b16 %v688
    %v803 = vunpack.c.l.b16 %v689
    %v804 = vunpack.c.h.b16 %v689
    %v805 = vunpack.c.l.b16 %v690
    %v806 = vunpack.c.h.b16 %v690
    %v807 = vunpack.c.l.b16 %v691
    %v808 = vunpack.c.h.b16 %v691
    %v809 = vunpack.c.l.b16 %v692
    %v810 = vunpack.c.h.b16 %v692
    %v811 = vunpack.c.l.b16 %v693
    %v812 = vunpack.c.h.b16 %v693
    %v813 = vunpack.c.l.b16 %v694
    %v814 = vunpack.c.h.b16 %v694
    %v815 = vunpack.c.l.b16 %v695
    %v816 = vunpack.c.h.b16 %v695
    %v817 = vunpack.c.l.b16 %v696
    %v818 = vunpack.c.h.b16 %v696
    %v819 = vunpack.c.l.b16 %v697
    %v820 = vunpack.c.h.b16 %v697
    %v821 = vunpack.c.l.b16 %v698
    %v822 = vunpack.c.h.b16 %v698
    %v823 = vunpack.c.l.b16 %v699
    %v824 = vunpack.c.h.b16 %v699
    %v825 = vunpack.c.l.b16 %v700
    %v826 = vunpack.c.h.b16 %v700
    %v827 = vunpack.c.l.b16 %v701
    %v828 = vunpack.c.h.b16 %v701
    %v829 = vunpack.c.l.b16 %v702
    %v830 = vunpack.c.h.b16 %v702
    %v831 = vunpack.c.l.b16 %v703
    %v832 = vunpack.c.h.b16 %v703
    %v833 = vunpack.c.l.b16 %v704
    %v834 = vunpack.c.h.b16 %v704
    %v835 = vunpack.c.l.b16 %v705
    %v836 = vunpack.c.h.b16 %v705
    %v837 = vunpack.c.l.b16 %v706
    %v838 = vunpack.c.h.b16 %v706
    %v839 = vunpack.c.l.b16 %v707
    %v840 = vunpack.c.h.b16 %v707
    %v841 = vunpack.c.l.b16 %v708
    %v842 = vunpack.c.h.b16 %v708
    %v843 = vunpack.c.l.b16 %v709
    %v844 = vunpack.c.h.b16 %v709
    %v845 = vunpack.c.l.b16 %v710
    %v846 = vunpack.c.h.b16 %v710
    %v847 = vunpack.c.l.b16 %v711
    %v848 = vunpack.c.h.b16 %v711
    %v849 = vunpack.c.l.b16 %v712
    %v850 = vunpack.c.h.b16 %v712
    %v851 = vunpack.c.l.b16 %v713
    %v852 = vunpack.c.h.b16 %v713
    %v853 = vunpack.c.l.b16 %v714
    %v854 = vunpack.c.h.b16 %v714
    %v855 = vunpack.c.l.b16 %v715
    %v856 = vunpack.c.h.b16 %v715
    %v857 = vunpack.c.l.b16 %v716
    %v858 = vunpack.c.h.b16 %v716
    %v859 = vunpack.c.l.b16 %v717
    %v860 = vunpack.c.h.b16 %v717
    %v861 = vunpack.c.l.b16 %v718
    %v862 = vunpack.c.h.b16 %v718
    %v863 = vpack.c.b16 %v769, %v767
    %v864 = vpack.c.b16 %v770, %v768
    %v865 = vpack.c.b16 %v773, %v771
    %v866 = vpack.c.b16 %v774, %v772
    %v867 = vpack.c.b16 %v777, %v775
    %v868 = vpack.c.b16 %v778, %v776
    %v869 = vpack.c.b16 %v781, %v779
    %v870 = vpack.c.b16 %v782, %v780
    %v871 = vpack.c.b16 %v785, %v783
    %v872 = vpack.c.b16 %v786, %v784
    %v873 = vpack.c.b16 %v789, %v787
    %v874 = vpack.c.b16 %v790, %v788
    %v875 = vpack.c.b16 %v793, %v791
    %v876 = vpack.c.b16 %v794, %v792
    %v877 = vpack.c.b16 %v797, %v795
    %v878 = vpack.c.b16 %v798, %v796
    %v879 = vpack.c.b16 %v801, %v799
    %v880 = vpack.c.b16 %v802, %v800
    %v881 = vpack.c.b16 %v805, %v803
    %v882 = vpack.c.b16 %v806, %v804
    %v883 = vpack.c.b16 %v809, %v807
    %v884 = vpack.c.b16 %v810, %v808
    %v885 = vpack.c.b16 %v813, %v811
    %v886 = vpack.c.b16 %v814, %v812
    %v887 = vpack.c.b16 %v817, %v815
    %v888 = vpack.c.b16 %v818, %v816
    %v889 = vpack.c.b16 %v821, %v819
    %v890 = vpack.c.b16 %v822, %v820
    %v891 = vpack.c.b16 %v825, %v823
    %v892 = vpack.c.b16 %v826, %v824
    %v893 = vpack.c.b16 %v829, %v827
    %v894 = vpack.c.b16 %v830, %v828
    %v895 = vpack.c.b16 %v833, %v831
    %v896 = vpack.c.b16 %v834, %v832
    %v897 = vpack.c.b16 %v837, %v835
    %v898 = vpack.c.b16 %v838, %v836
    %v899 = vpack.c.b16 %v841, %v839
    %v900 = vpack.c.b16 %v842, %v840
    %v901 = vpack.c.b16 %v845, %v843
    %v902 = vpack.c.b16 %v846, %v844
    %v903 = vpack.c.b16 %v849, %v847
    %v904 = vpack.c.b16 %v850, %v848
    %v905 = vpack.c.b16 %v853, %v851
    %v906 = vpack.c.b16 %v854, %v852
    %v907 = vpack.c.b16 %v857, %v855
    %v908 = vpack.c.b16 %v858, %v856
    %v909 = vpack.c.b16 %v861, %v859
    %v910 = vpack.c.b16 %v862, %v860
    %959 = vmatprep.subr.bf16.mxu0 %v864
    %960 = vmatpush1.bf16.msra.mxu0 %v863
    %961 = vmatprep.subr.bf16.mxu0 %v866
    %962 = vmatpush1.bf16.msra.mxu0 %v865
    %963 = vmatprep.subr.bf16.mxu0 %v868
    %964 = vmatpush1.bf16.msra.mxu0 %v867
    %965 = vmatprep.subr.bf16.mxu0 %v870
    %966 = vmatpush1.bf16.msra.mxu0 %v869
    %967 = vmatprep.subr.bf16.mxu0 %v872
    %968 = vmatpush1.bf16.msra.mxu0 %v871
    %969 = vmatprep.subr.bf16.mxu0 %v874
    %970 = vmatpush1.bf16.msra.mxu0 %v873
    %971 = vmatprep.subr.bf16.mxu0 %v876
    %972 = vmatpush1.bf16.msra.mxu0 %v875
    %973 = vmatprep.subr.bf16.mxu0 %v878
    %974 = vmatpush1.bf16.msra.mxu0 %v877
    %975 = vmatprep.subr.bf16.mxu0 %v880
    %976 = vmatpush1.bf16.msra.mxu0 %v879
    %977 = vmatprep.subr.bf16.mxu0 %v882
    %978 = vmatpush1.bf16.msra.mxu0 %v881
    %979 = vmatprep.subr.bf16.mxu0 %v884
    %980 = vmatpush1.bf16.msra.mxu0 %v883
    %981 = vmatprep.subr.bf16.mxu0 %v886
    %982 = vmatpush1.bf16.msra.mxu0 %v885
    %983 = vmatprep.subr.bf16.mxu0 %v888
    %984 = vmatpush1.bf16.msra.mxu0 %v887
    %985 = vmatprep.subr.bf16.mxu0 %v890
    %986 = vmatpush1.bf16.msra.mxu0 %v889
    %987 = vmatprep.subr.bf16.mxu0 %v892
    %988 = vmatpush1.bf16.msra.mxu0 %v891
    %989 = vmatprep.subr.bf16.mxu0 %v894
    %990 = vmatpush1.bf16.msra.mxu0 %v893
    %991 = vmatprep.mubr.bf16.mxu0 %v639
    %992 = vmatmul.mubr.bf16.gmra.mrb[0].mxu0 %v659
    %v993 = vpop.f32.mrb[0].mxu0
    %v994 = vadd.f32 0.0, %v993
    %v995 = vpop.f32.mrb[0].mxu0
    %v996 = vadd.f32 0.0, %v995
    %v997 = vpop.f32.mrb[0].mxu0
    %v998 = vadd.f32 0.0, %v997
    %v999 = vpop.f32.mrb[0].mxu0
    %v1000 = vadd.f32 0.0, %v999
    %1001 = vmatprep.mubr.bf16.mxu0 %v640
    %1002 = vmatmul.mubr.bf16.gmra.mrb[0].mxu0 %v660
    %v1003 = vpop.f32.mrb[0].mxu0
    %v1004 = vadd.f32 0.0, %v1003
    %v1005 = vpop.f32.mrb[0].mxu0
    %v1006 = vadd.f32 0.0, %v1005
    %v1007 = vpop.f32.mrb[0].mxu0
    %v1008 = vadd.f32 0.0, %v1007
    %v1009 = vpop.f32.mrb[0].mxu0
    %v1010 = vadd.f32 0.0, %v1009
    %1011 = vdwg.mxu0
    %1012 = vmatprep.subr.bf16.mxu0 %v896
    %1013 = vmatpush1.bf16.msra.mxu0 %v895
    %1014 = vmatprep.subr.bf16.mxu0 %v898
    %1015 = vmatpush1.bf16.msra.mxu0 %v897
    %1016 = vmatprep.subr.bf16.mxu0 %v900
    %1017 = vmatpush1.bf16.msra.mxu0 %v899
    %1018 = vmatprep.subr.bf16.mxu0 %v902
    %1019 = vmatpush1.bf16.msra.mxu0 %v901
    %1020 = vmatprep.subr.bf16.mxu0 %v904
    %1021 = vmatpush1.bf16.msra.mxu0 %v903
    %1022 = vmatprep.subr.bf16.mxu0 %v906
    %1023 = vmatpush1.bf16.msra.mxu0 %v905
    %1024 = vmatprep.subr.bf16.mxu0 %v908
    %1025 = vmatpush1.bf16.msra.mxu0 %v907
    %1026 = vmatprep.subr.bf16.mxu0 %v910
    %1027 = vmatpush1.bf16.msra.mxu0 %v909
    %1028 = vmatprep.subr.bf16.mxu0 0
    %1029 = vmatpush1.bf16.msra.mxu0 0
    %1030 = vmatprep.subr.bf16.mxu0 0
    %1031 = vmatpush1.bf16.msra.mxu0 0
    %1032 = vmatprep.subr.bf16.mxu0 0
    %1033 = vmatpush1.bf16.msra.mxu0 0
    %1034 = vmatprep.subr.bf16.mxu0 0
    %1035 = vmatpush1.bf16.msra.mxu0 0
    %1036 = vmatprep.subr.bf16.mxu0 0
    %1037 = vmatpush1.bf16.msra.mxu0 0
    %1038 = vmatprep.subr.bf16.mxu0 0
    %1039 = vmatpush1.bf16.msra.mxu0 0
    %1040 = vmatprep.subr.bf16.mxu0 0
    %1041 = vmatpush1.bf16.msra.mxu0 0
    %1042 = vmatprep.subr.bf16.mxu0 0
    %1043 = vmatpush1.bf16.msra.mxu0 0
    %1044 = vmatprep.mubr.bf16.mxu0 0
    %1045 = vmatmul.mubr.bf16.gmra.mrb[0].mxu0 %v669
    %v1046 = vpop.f32.mrb[0].mxu0
    %v1047 = vadd.f32 %v994, %v1046
    %v1048 = vpop.f32.mrb[0].mxu0
    %v1049 = vadd.f32 %v996, %v1048
    %v1050 = vpop.f32.mrb[0].mxu0
    %v1051 = vadd.f32 %v998, %v1050
    %v1052 = vpop.f32.mrb[0].mxu0
    %v1053 = vadd.f32 %v1000, %v1052
    %1054 = vmatprep.mubr.bf16.mxu0 0
    %1055 = vmatmul.mubr.bf16.gmra.mrb[0].mxu0 %v670
    %v1056 = vpop.f32.mrb[0].mxu0
    %v1057 = vadd.f32 %v1004, %v1056
    %v1058 = vpop.f32.mrb[0].mxu0
    %v1059 = vadd.f32 %v1006, %v1058
    %v1060 = vpop.f32.mrb[0].mxu0
    %v1061 = vadd.f32 %v1008, %v1060
    %v1062 = vpop.f32.mrb[0].mxu0
    %v1063 = vadd.f32 %v1010, %v1062
    %1064 = vdwg.mxu0
    %v1065 = vld [vmem:[#allocation7] sm:$0x3]
    %v1067 = vlaneseq
    %v1068 = vshrl.u32 %v1067, 7
    %v1069 = vsub.s32 0, %v1068
    %v1070 = vrot.slane %v1065, %v1069
    %v1071 = vlaneseq
    %v1072 = vshrl.u32 %v1071, 7
    %v1073 = vsub.s32 1, %v1072
    %v1074 = vrot.slane %v1065, %v1073
    %v1077 = vmul.f32 %v1047, %v1070
    %v1078 = vmul.f32 %v1049, %v1074
    %v1079 = vmul.f32 %v1051, %v1070
    %v1080 = vmul.f32 %v1053, %v1074
    %v1081 = vmul.f32 %v1057, %v1070
    %v1082 = vmul.f32 %v1059, %v1074
    %v1083 = vmul.f32 %v1061, %v1070
    %v1084 = vmul.f32 %v1063, %v1074
    %v1085 = vld [vmem:[#allocation8] sm:$0x3]
    %v1087 = vlaneseq
    %v1088 = vshrl.u32 %v1087, 7
    %v1089 = vsub.s32 0, %v1088
    %v1090 = vrot.slane %v1085, %v1089
    %v1091 = vlaneseq
    %v1092 = vshrl.u32 %v1091, 7
    %v1093 = vsub.s32 1, %v1092
    %v1094 = vrot.slane %v1085, %v1093
    %v1097 = vadd.f32 %v1077, %v1090
    %v1098 = vadd.f32 %v1078, %v1094
    %v1099 = vadd.f32 %v1079, %v1090
    %v1100 = vadd.f32 %v1080, %v1094
    %v1101 = vadd.f32 %v1081, %v1090
    %v1102 = vadd.f32 %v1082, %v1094
    %v1103 = vadd.f32 %v1083, %v1090
    %v1104 = vadd.f32 %v1084, %v1094
    %v1105 = vld [vmem:[%s7] sm:$0xff]
    %v1106 = vld [vmem:[%s7 + $0x8] sm:$0xff]
    %v1107 = vld [vmem:[%s7 + $0x10] sm:$0xff]
    %v1108 = vld [vmem:[%s7 + $0x18] sm:$0xff]
    %v1109 = vld [vmem:[%s7 + $0x20] sm:$0xff]
    %v1110 = vld [vmem:[%s7 + $0x28] sm:$0xff]
    %v1111 = vld [vmem:[%s7 + $0x30] sm:$0xff]
    %v1112 = vld [vmem:[%s7 + $0x38] sm:$0xff]
    %v1113 = vld [vmem:[%s7 + $0x40] sm:$0xff]
    %v1114 = vld [vmem:[%s7 + $0x48] sm:$0xff]
    %v1115 = vld [vmem:[%s7 + $0x50] sm:$0xff]
    %v1116 = vld [vmem:[%s7 + $0x58] sm:$0xff]
    %v1117 = vld [vmem:[%s7 + $0x60] sm:$0xff]
    %v1118 = vld [vmem:[%s7 + $0x68] sm:$0xff]
    %v1119 = vld [vmem:[%s7 + $0x70] sm:$0xff]
    %v1120 = vld [vmem:[%s7 + $0x78] sm:$0xff]
    %v1121 = vld [vmem:[%s7 + $0x80] sm:$0xff]
    %v1122 = vld [vmem:[%s7 + $0x88] sm:$0xff]
    %v1123 = vld [vmem:[%s7 + $0x90] sm:$0xff]
    %v1124 = vld [vmem:[%s7 + $0x98] sm:$0xff]
    %v1125 = vld [vmem:[%s7 + $0xa0] sm:$0xff]
    %v1126 = vld [vmem:[%s7 + $0xa8] sm:$0xff]
    %v1127 = vld [vmem:[%s7 + $0xb0] sm:$0xff]
    %v1128 = vld [vmem:[%s7 + $0xb8] sm:$0xff]
    %v1129 = vld [vmem:[%s7 + $0xc0] sm:$0xff]
    %v1130 = vld [vmem:[%s7 + $0xc8] sm:$0xff]
    %v1131 = vld [vmem:[%s7 + $0xd0] sm:$0xff]
    %v1132 = vld [vmem:[%s7 + $0xd8] sm:$0xff]
    %v1133 = vld [vmem:[%s7 + $0xe0] sm:$0xff]
    %v1134 = vld [vmem:[%s7 + $0xe8] sm:$0xff]
    %v1135 = vld [vmem:[%s7 + $0xf0] sm:$0xff]
    %v1136 = vld [vmem:[%s7 + $0xf8] sm:$0xff]
    %1137 = vmatprep.subr.mxu0 0.0
    %1138 = vmatpush1.msra.mxu0 %v1105
    %1139 = vmatprep.subr.mxu0 0.0
    %1140 = vmatpush1.msra.mxu0 %v1106
    %1141 = vmatprep.subr.mxu0 0.0
    %1142 = vmatpush1.msra.mxu0 %v1107
    %1143 = vmatprep.subr.mxu0 0.0
    %1144 = vmatpush1.msra.mxu0 %v1108
    %1145 = vmatprep.subr.mxu0 0.0
    %1146 = vmatpush1.msra.mxu0 %v1109
    %1147 = vmatprep.subr.mxu0 0.0
    %1148 = vmatpush1.msra.mxu0 %v1110
    %1149 = vmatprep.subr.mxu0 0.0
    %1150 = vmatpush1.msra.mxu0 %v1111
    %1151 = vmatprep.subr.mxu0 0.0
    %1152 = vmatpush1.msra.mxu0 %v1112
    %1153 = vmatprep.subr.mxu0 0.0
    %1154 = vmatpush1.msra.mxu0 %v1113
    %1155 = vmatprep.subr.mxu0 0.0
    %1156 = vmatpush1.msra.mxu0 %v1114
    %1157 = vmatprep.subr.mxu0 0.0
    %1158 = vmatpush1.msra.mxu0 %v1115
    %1159 = vmatprep.subr.mxu0 0.0
    %1160 = vmatpush1.msra.mxu0 %v1116
    %1161 = vmatprep.subr.mxu0 0.0
    %1162 = vmatpush1.msra.mxu0 %v1117
    %1163 = vmatprep.subr.mxu0 0.0
    %1164 = vmatpush1.msra.mxu0 %v1118
    %1165 = vmatprep.subr.mxu0 0.0
    %1166 = vmatpush1.msra.mxu0 %v1119
    %1167 = vmatprep.subr.mxu0 0.0
    %1168 = vmatpush1.msra.mxu0 %v1120
    %1169 = vmatprep.subr.mxu0 0.0
    %1170 = vmatpush1.msra.mxu0 %v1121
    %1171 = vmatprep.subr.mxu0 0.0
    %1172 = vmatpush1.msra.mxu0 %v1122
    %1173 = vmatprep.subr.mxu0 0.0
    %1174 = vmatpush1.msra.mxu0 %v1123
    %1175 = vmatprep.subr.mxu0 0.0
    %1176 = vmatpush1.msra.mxu0 %v1124
    %1177 = vmatprep.subr.mxu0 0.0
    %1178 = vmatpush1.msra.mxu0 %v1125
    %1179 = vmatprep.subr.mxu0 0.0
    %1180 = vmatpush1.msra.mxu0 %v1126
    %1181 = vmatprep.subr.mxu0 0.0
    %1182 = vmatpush1.msra.mxu0 %v1127
    %1183 = vmatprep.subr.mxu0 0.0
    %1184 = vmatpush1.msra.mxu0 %v1128
    %1185 = vmatprep.subr.mxu0 0.0
    %1186 = vmatpush1.msra.mxu0 %v1129
    %1187 = vmatprep.subr.mxu0 0.0
    %1188 = vmatpush1.msra.mxu0 %v1130
    %1189 = vmatprep.subr.mxu0 0.0
    %1190 = vmatpush1.msra.mxu0 %v1131
    %1191 = vmatprep.subr.mxu0 0.0
    %1192 = vmatpush1.msra.mxu0 %v1132
    %1193 = vmatprep.subr.mxu0 0.0
    %1194 = vmatpush1.msra.mxu0 %v1133
    %1195 = vmatprep.subr.mxu0 0.0
    %1196 = vmatpush1.msra.mxu0 %v1134
    %1197 = vmatprep.subr.mxu0 0.0
    %1198 = vmatpush1.msra.mxu0 %v1135
    %1199 = vmatprep.subr.mxu0 0.0
    %1200 = vmatpush1.msra.mxu0 %v1136
    %1201 = vmatprep.mubr.f32.mxu0 %v1098
    %1202 = vmatmul.mubr.f32.gmra.mrb[0].mxu0 %v1097
    %v1203 = vpop.f32.mrb[0].mxu0
    %v1204 = vadd.f32 0.0, %v1203
    %v1205 = vpop.f32.mrb[0].mxu0
    %1206 = vmatprep.mubr.f32.mxu0 %v1100
    %1207 = vmatmul.mubr.f32.gmra.mrb[0].mxu0 %v1099
    %v1208 = vpop.f32.mrb[0].mxu0
    %v1209 = vadd.f32 0.0, %v1208
    %v1210 = vpop.f32.mrb[0].mxu0
    %1211 = vmatprep.mubr.f32.mxu0 %v1102
    %1212 = vmatmul.mubr.f32.gmra.mrb[0].mxu0 %v1101
    %v1213 = vpop.f32.mrb[0].mxu0
    %v1214 = vadd.f32 0.0, %v1213
    %v1215 = vpop.f32.mrb[0].mxu0
    %1216 = vmatprep.mubr.f32.mxu0 %v1104
    %1217 = vmatmul.mubr.f32.gmra.mrb[0].mxu0 %v1103
    %v1218 = vpop.f32.mrb[0].mxu0
    %v1219 = vadd.f32 0.0, %v1218
    %v1220 = vpop.f32.mrb[0].mxu0
    %1221 = vdwg.mxu0
    %v1222 = vld [vmem:[%s8] sm:$0xff]
    %v1223 = vld [vmem:[%s8 + $0x8] sm:$0xff]
    %vm1224 = vcmask 130048
    %v1226 = vsel %vm1224, %v1204, 0
    %v1229 = vsel %vm1224, %v1209, 0
    %v1232 = vsel %vm1224, %v1214, 0
    %v1235 = vsel %vm1224, %v1219, 0
    %1237 = vmatprep.subr.mxu0 0.0
    %1238 = vmatpush1.msra.mxu0 %v1222
    %1239 = vmatprep.subr.mxu0 0.0
    %1240 = vmatpush1.msra.mxu0 %v1223
    %1241 = vmatprep.subr.mxu0 0.0
    %1242 = vmatpush1.msra.mxu0 0.0
    %1243 = vmatprep.subr.mxu0 0.0
    %1244 = vmatpush1.msra.mxu0 0.0
    %1245 = vmatprep.subr.mxu0 0.0
    %1246 = vmatpush1.msra.mxu0 0.0
    %1247 = vmatprep.subr.mxu0 0.0
    %1248 = vmatpush1.msra.mxu0 0.0
    %1249 = vmatprep.subr.mxu0 0.0
    %1250 = vmatpush1.msra.mxu0 0.0
    %1251 = vmatprep.subr.mxu0 0.0
    %1252 = vmatpush1.msra.mxu0 0.0
    %1253 = vmatprep.subr.mxu0 0.0
    %1254 = vmatpush1.msra.mxu0 0.0
    %1255 = vmatprep.subr.mxu0 0.0
    %1256 = vmatpush1.msra.mxu0 0.0
    %1257 = vmatprep.subr.mxu0 0.0
    %1258 = vmatpush1.msra.mxu0 0.0
    %1259 = vmatprep.subr.mxu0 0.0
    %1260 = vmatpush1.msra.mxu0 0.0
    %1261 = vmatprep.subr.mxu0 0.0
    %1262 = vmatpush1.msra.mxu0 0.0
    %1263 = vmatprep.subr.mxu0 0.0
    %1264 = vmatpush1.msra.mxu0 0.0
    %1265 = vmatprep.subr.mxu0 0.0
    %1266 = vmatpush1.msra.mxu0 0.0
    %1267 = vmatprep.subr.mxu0 0.0
    %1268 = vmatpush1.msra.mxu0 0.0
    %1269 = vmatprep.subr.mxu0 0.0
    %1270 = vmatpush1.msra.mxu0 0.0
    %1271 = vmatprep.subr.mxu0 0.0
    %1272 = vmatpush1.msra.mxu0 0.0
    %1273 = vmatprep.subr.mxu0 0.0
    %1274 = vmatpush1.msra.mxu0 0.0
    %1275 = vmatprep.subr.mxu0 0.0
    %1276 = vmatpush1.msra.mxu0 0.0
    %1277 = vmatprep.subr.mxu0 0.0
    %1278 = vmatpush1.msra.mxu0 0.0
    %1279 = vmatprep.subr.mxu0 0.0
    %1280 = vmatpush1.msra.mxu0 0.0
    %1281 = vmatprep.subr.mxu0 0.0
    %1282 = vmatpush1.msra.mxu0 0.0
    %1283 = vmatprep.subr.mxu0 0.0
    %1284 = vmatpush1.msra.mxu0 0.0
    %1285 = vmatprep.subr.mxu0 0.0
    %1286 = vmatpush1.msra.mxu0 0.0
    %1287 = vmatprep.subr.mxu0 0.0
    %1288 = vmatpush1.msra.mxu0 0.0
    %1289 = vmatprep.subr.mxu0 0.0
    %1290 = vmatpush1.msra.mxu0 0.0
    %1291 = vmatprep.subr.mxu0 0.0
    %1292 = vmatpush1.msra.mxu0 0.0
    %1293 = vmatprep.subr.mxu0 0.0
    %1294 = vmatpush1.msra.mxu0 0.0
    %1295 = vmatprep.subr.mxu0 0.0
    %1296 = vmatpush1.msra.mxu0 0.0
    %1297 = vmatprep.subr.mxu0 0.0
    %1298 = vmatpush1.msra.mxu0 0.0
    %1299 = vmatprep.subr.mxu0 0.0
    %1300 = vmatpush1.msra.mxu0 0.0
    %1301 = vmatprep.mubr.f32.mxu0 0.0
    %1302 = vmatmul.mubr.f32.gmra.mrb[0].mxu0 %v1226
    %v1303 = vpop.f32.mrb[0].mxu0
    %v1304 = vadd.f32 0.0, %v1303
    %v1305 = vpop.f32.mrb[0].mxu0
    %1306 = vmatprep.mubr.f32.mxu0 0.0
    %1307 = vmatmul.mubr.f32.gmra.mrb[0].mxu0 %v1229
    %v1308 = vpop.f32.mrb[0].mxu0
    %v1309 = vadd.f32 0.0, %v1308
    %v1310 = vpop.f32.mrb[0].mxu0
    %1311 = vmatprep.mubr.f32.mxu0 0.0
    %1312 = vmatmul.mubr.f32.gmra.mrb[0].mxu0 %v1232
    %v1313 = vpop.f32.mrb[0].mxu0
    %v1314 = vadd.f32 0.0, %v1313
    %v1315 = vpop.f32.mrb[0].mxu0
    %1316 = vmatprep.mubr.f32.mxu0 0.0
    %1317 = vmatmul.mubr.f32.gmra.mrb[0].mxu0 %v1235
    %v1318 = vpop.f32.mrb[0].mxu0
    %v1319 = vadd.f32 0.0, %v1318
    %v1320 = vpop.f32.mrb[0].mxu0
    %1321 = vdwg.mxu0
    %v1322 = vld [vmem:[#allocation10] sm:$0x1]
    %v1324 = vlaneseq
    %v1325 = vshrl.u32 %v1324, 7
    %v1326 = vsub.s32 0, %v1325
    %v1327 = vrot.slane %v1322, %v1326
    %v1329 = vmul.f32 %v1304, %v1327
    %v1330 = vmul.f32 %v1309, %v1327
    %v1331 = vmul.f32 %v1314, %v1327
    %v1332 = vmul.f32 %v1319, %v1327
    %v1333 = vld [vmem:[#allocation11] sm:$0x1]
    %v1335 = vlaneseq
    %v1336 = vshrl.u32 %v1335, 7
    %v1337 = vsub.s32 0, %v1336
    %v1338 = vrot.slane %v1333, %v1337
    %v1340 = vadd.f32 %v1329, %v1338
    %v1341 = vadd.f32 %v1330, %v1338
    %v1342 = vadd.f32 %v1331, %v1338
    %v1343 = vadd.f32 %v1332, %v1338
    %v1344 = vadd.f32 %v1340, 3.0
    %v1345 = vadd.f32 %v1341, 3.0
    %v1346 = vadd.f32 %v1342, 3.0
    %v1347 = vadd.f32 %v1343, 3.0
    %v1348 = vmax.f32 %v1344, 0.0
    %v1349 = vmax.f32 %v1345, 0.0
    %v1350 = vmax.f32 %v1346, 0.0
    %v1351 = vmax.f32 %v1347, 0.0
    %v1352 = vmin.f32 %v1348, 6.0
    %v1353 = vmin.f32 %v1349, 6.0
    %v1354 = vmin.f32 %v1350, 6.0
    %v1355 = vmin.f32 %v1351, 6.0
    %v1356 = vmul.f32 %v1340, %v1352
    %v1357 = vmul.f32 %v1341, %v1353
    %v1358 = vmul.f32 %v1342, %v1354
    %v1359 = vmul.f32 %v1343, %v1355
    %v1360 = vmul.f32 %v1356, 0.16666667
    %v1361 = vmul.f32 %v1357, 0.16666667
    %v1362 = vmul.f32 %v1358, 0.16666667
    %v1363 = vmul.f32 %v1359, 0.16666667
    %v1364 = vld [vmem:[#allocation13] sm:$0xf]
    %v1367 = vunpack.c.l.s4 1983009808
    %v1368 = vunpack.c.0.s8 %v1367
    %v1369 = vlaneseq
    %v1370 = vshrl.u32 %v1369, 7
    %v1371 = vsub.s32 %v1368, %v1370
    %v1372 = vrot.slane %v1364, %v1371
    %v1373 = vcombine.high %v1372, %v1372
    %vm1374 = vcmask 15360
    %v1376 = vsel %vm1374, %v1360, 0
    %v1379 = vsel %vm1374, %v1361, 0
    %v1382 = vsel %vm1374, %v1362, 0
    %v1385 = vsel %vm1374, %v1363, 0
    %vm1387 = vcmask 1041408
    %v1388 = vsel %vm1387, %v1372, 0
    %v1390 = vsel %vm1387, %v1373, 0
    %1392 = vmatprep.subr.mxu0 %v1390
    %1393 = vmatpush1.msra.mxu0 %v1388
    %1394 = vmatprep.subr.mxu0 0.0
    %1395 = vmatpush1.msra.mxu0 0.0
    %1396 = vmatprep.subr.mxu0 0.0
    %1397 = vmatpush1.msra.mxu0 0.0
    %1398 = vmatprep.subr.mxu0 0.0
    %1399 = vmatpush1.msra.mxu0 0.0
    %1400 = vmatprep.subr.mxu0 0.0
    %1401 = vmatpush1.msra.mxu0 0.0
    %1402 = vmatprep.subr.mxu0 0.0
    %1403 = vmatpush1.msra.mxu0 0.0
    %1404 = vmatprep.subr.mxu0 0.0
    %1405 = vmatpush1.msra.mxu0 0.0
    %1406 = vmatprep.subr.mxu0 0.0
    %1407 = vmatpush1.msra.mxu0 0.0
    %1408 = vmatprep.subr.mxu0 0.0
    %1409 = vmatpush1.msra.mxu0 0.0
    %1410 = vmatprep.subr.mxu0 0.0
    %1411 = vmatpush1.msra.mxu0 0.0
    %1412 = vmatprep.subr.mxu0 0.0
    %1413 = vmatpush1.msra.mxu0 0.0
    %1414 = vmatprep.subr.mxu0 0.0
    %1415 = vmatpush1.msra.mxu0 0.0
    %1416 = vmatprep.subr.mxu0 0.0
    %1417 = vmatpush1.msra.mxu0 0.0
    %1418 = vmatprep.subr.mxu0 0.0
    %1419 = vmatpush1.msra.mxu0 0.0
    %1420 = vmatprep.subr.mxu0 0.0
    %1421 = vmatpush1.msra.mxu0 0.0
    %1422 = vmatprep.subr.mxu0 0.0
    %1423 = vmatpush1.msra.mxu0 0.0
    %1424 = vmatprep.subr.mxu0 0.0
    %1425 = vmatpush1.msra.mxu0 0.0
    %1426 = vmatprep.subr.mxu0 0.0
    %1427 = vmatpush1.msra.mxu0 0.0
    %1428 = vmatprep.subr.mxu0 0.0
    %1429 = vmatpush1.msra.mxu0 0.0
    %1430 = vmatprep.subr.mxu0 0.0
    %1431 = vmatpush1.msra.mxu0 0.0
    %1432 = vmatprep.subr.mxu0 0.0
    %1433 = vmatpush1.msra.mxu0 0.0
    %1434 = vmatprep.subr.mxu0 0.0
    %1435 = vmatpush1.msra.mxu0 0.0
    %1436 = vmatprep.subr.mxu0 0.0
    %1437 = vmatpush1.msra.mxu0 0.0
    %1438 = vmatprep.subr.mxu0 0.0
    %1439 = vmatpush1.msra.mxu0 0.0
    %1440 = vmatprep.subr.mxu0 0.0
    %1441 = vmatpush1.msra.mxu0 0.0
    %1442 = vmatprep.subr.mxu0 0.0
    %1443 = vmatpush1.msra.mxu0 0.0
    %1444 = vmatprep.subr.mxu0 0.0
    %1445 = vmatpush1.msra.mxu0 0.0
    %1446 = vmatprep.subr.mxu0 0.0
    %1447 = vmatpush1.msra.mxu0 0.0
    %1448 = vmatprep.subr.mxu0 0.0
    %1449 = vmatpush1.msra.mxu0 0.0
    %1450 = vmatprep.subr.mxu0 0.0
    %1451 = vmatpush1.msra.mxu0 0.0
    %1452 = vmatprep.subr.mxu0 0.0
    %1453 = vmatpush1.msra.mxu0 0.0
    %1454 = vmatprep.subr.mxu0 0.0
    %1455 = vmatpush1.msra.mxu0 0.0
    %1456 = vmatprep.mubr.f32.mxu0 0.0
    %1457 = vmatmul.mubr.f32.gmra.mrb[0].mxu0 %v1376
    %v1458 = vpop.f32.mrb[0].mxu0
    %v1459 = vadd.f32 0.0, %v1458
    %v1460 = vpop.f32.mrb[0].mxu0
    %v1461 = vadd.f32 0.0, %v1460
    %1462 = vmatprep.mubr.f32.mxu0 0.0
    %1463 = vmatmul.mubr.f32.gmra.mrb[0].mxu0 %v1379
    %v1464 = vpop.f32.mrb[0].mxu0
    %v1465 = vadd.f32 0.0, %v1464
    %v1466 = vpop.f32.mrb[0].mxu0
    %v1467 = vadd.f32 0.0, %v1466
    %1468 = vmatprep.mubr.f32.mxu0 0.0
    %1469 = vmatmul.mubr.f32.gmra.mrb[0].mxu0 %v1382
    %v1470 = vpop.f32.mrb[0].mxu0
    %v1471 = vadd.f32 0.0, %v1470
    %v1472 = vpop.f32.mrb[0].mxu0
    %v1473 = vadd.f32 0.0, %v1472
    %1474 = vmatprep.mubr.f32.mxu0 0.0
    %1475 = vmatmul.mubr.f32.gmra.mrb[0].mxu0 %v1385
    %v1476 = vpop.f32.mrb[0].mxu0
    %v1477 = vadd.f32 0.0, %v1476
    %v1478 = vpop.f32.mrb[0].mxu0
    %v1479 = vadd.f32 0.0, %v1478
    %1480 = vdwg.mxu0
    %v1481 = vxor.u32 %v1459, 2147483648
    %v1482 = vxor.u32 %v1461, 2147483648
    %v1483 = vxor.u32 %v1465, 2147483648
    %v1484 = vxor.u32 %v1467, 2147483648
    %v1485 = vxor.u32 %v1471, 2147483648
    %v1486 = vxor.u32 %v1473, 2147483648
    %v1487 = vxor.u32 %v1477, 2147483648
    %v1488 = vxor.u32 %v1479, 2147483648
    %v1489 = vmul.f32 %v1481, 1.442695
    %v1490 = vpow.pop %v1489
    %v1491 = vmul.f32 %v1482, 1.442695
    %v1492 = vpow.pop %v1491
    %v1493 = vmul.f32 %v1483, 1.442695
    %v1494 = vpow.pop %v1493
    %v1495 = vmul.f32 %v1484, 1.442695
    %v1496 = vpow.pop %v1495
    %v1497 = vmul.f32 %v1485, 1.442695
    %v1498 = vpow.pop %v1497
    %v1499 = vmul.f32 %v1486, 1.442695
    %v1500 = vpow.pop %v1499
    %v1501 = vmul.f32 %v1487, 1.442695
    %v1502 = vpow.pop %v1501
    %v1503 = vmul.f32 %v1488, 1.442695
    %v1504 = vpow.pop %v1503
    %v1505 = vadd.f32 %v1490, 1.0
    %v1506 = vadd.f32 %v1492, 1.0
    %v1507 = vadd.f32 %v1494, 1.0
    %v1508 = vadd.f32 %v1496, 1.0
    %v1509 = vadd.f32 %v1498, 1.0
    %v1510 = vadd.f32 %v1500, 1.0
    %v1511 = vadd.f32 %v1502, 1.0
    %v1512 = vadd.f32 %v1504, 1.0
    %v1513 = vrcp.pop %v1505
    %v1514 = vmul.f32 1.0, %v1513
    %v1515 = vrcp.pop %v1506
    %v1516 = vmul.f32 1.0, %v1515
    %v1517 = vrcp.pop %v1507
    %v1518 = vmul.f32 1.0, %v1517
    %v1519 = vrcp.pop %v1508
    %v1520 = vmul.f32 1.0, %v1519
    %v1521 = vrcp.pop %v1509
    %v1522 = vmul.f32 1.0, %v1521
    %v1523 = vrcp.pop %v1510
    %v1524 = vmul.f32 1.0, %v1523
    %v1525 = vrcp.pop %v1511
    %v1526 = vmul.f32 1.0, %v1525
    %v1527 = vrcp.pop %v1512
    %v1528 = vmul.f32 1.0, %v1527
    %v1529 = vld [vmem:[#allocation14] sm:$0x3]
    %vm1530 = vcmask 261120
    %v1532 = vsel %vm1530, %v1529, 0
    %1534 = vmatprep.subr.mxu0 %v1098
    %1535 = vmatpush1.msra.mxu0 %v1097
    %1536 = vmatprep.subr.mxu0 %v1100
    %1537 = vmatpush1.msra.mxu0 %v1099
    %1538 = vmatprep.subr.mxu0 %v1102
    %1539 = vmatpush1.msra.mxu0 %v1101
    %1540 = vmatprep.subr.mxu0 %v1104
    %1541 = vmatpush1.msra.mxu0 %v1103
    %1542 = vmatprep.subr.mxu0 0.0
    %1543 = vmatpush1.msra.mxu0 0.0
    %1544 = vmatprep.subr.mxu0 0.0
    %1545 = vmatpush1.msra.mxu0 0.0
    %1546 = vmatprep.subr.mxu0 0.0
    %1547 = vmatpush1.msra.mxu0 0.0
    %1548 = vmatprep.subr.mxu0 0.0
    %1549 = vmatpush1.msra.mxu0 0.0
    %1550 = vmatprep.subr.mxu0 0.0
    %1551 = vmatpush1.msra.mxu0 0.0
    %1552 = vmatprep.subr.mxu0 0.0
    %1553 = vmatpush1.msra.mxu0 0.0
    %1554 = vmatprep.subr.mxu0 0.0
    %1555 = vmatpush1.msra.mxu0 0.0
    %1556 = vmatprep.subr.mxu0 0.0
    %1557 = vmatpush1.msra.mxu0 0.0
    %1558 = vmatprep.subr.mxu0 0.0
    %1559 = vmatpush1.msra.mxu0 0.0
    %1560 = vmatprep.subr.mxu0 0.0
    %1561 = vmatpush1.msra.mxu0 0.0
    %1562 = vmatprep.subr.mxu0 0.0
    %1563 = vmatpush1.msra.mxu0 0.0
    %1564 = vmatprep.subr.mxu0 0.0
    %1565 = vmatpush1.msra.mxu0 0.0
    %1566 = vmatprep.subr.mxu0 0.0
    %1567 = vmatpush1.msra.mxu0 0.0
    %1568 = vmatprep.subr.mxu0 0.0
    %1569 = vmatpush1.msra.mxu0 0.0
    %1570 = vmatprep.subr.mxu0 0.0
    %1571 = vmatpush1.msra.mxu0 0.0
    %1572 = vmatprep.subr.mxu0 0.0
    %1573 = vmatpush1.msra.mxu0 0.0
    %1574 = vmatprep.subr.mxu0 0.0
    %1575 = vmatpush1.msra.mxu0 0.0
    %1576 = vmatprep.subr.mxu0 0.0
    %1577 = vmatpush1.msra.mxu0 0.0
    %1578 = vmatprep.subr.mxu0 0.0
    %1579 = vmatpush1.msra.mxu0 0.0
    %1580 = vmatprep.subr.mxu0 0.0
    %1581 = vmatpush1.msra.mxu0 0.0
    %1582 = vmatprep.subr.mxu0 0.0
    %1583 = vmatpush1.msra.mxu0 0.0
    %1584 = vmatprep.subr.mxu0 0.0
    %1585 = vmatpush1.msra.mxu0 0.0
    %1586 = vmatprep.subr.mxu0 0.0
    %1587 = vmatpush1.msra.mxu0 0.0
    %1588 = vmatprep.subr.mxu0 0.0
    %1589 = vmatpush1.msra.mxu0 0.0
    %1590 = vmatprep.subr.mxu0 0.0
    %1591 = vmatpush1.msra.mxu0 0.0
    %1592 = vmatprep.subr.mxu0 0.0
    %1593 = vmatpush1.msra.mxu0 0.0
    %1594 = vmatprep.subr.mxu0 0.0
    %1595 = vmatpush1.msra.mxu0 0.0
    %1596 = vmatprep.subr.mxu0 0.0
    %1597 = vmatpush1.msra.mxu0 0.0
    %1598 = vmatprep.mubr.f32.mxu0 0.0
    %1599 = vmatmul.mubr.f32.gmra.mrb[0].mxu0 %v1532
    %v1600 = vpop.f32.mrb[0].mxu0
    %v1601 = vadd.f32 0.0, %v1600
    %v1602 = vpop.f32.mrb[0].mxu0
    %v1603 = vadd.f32 0.0, %v1602
    %1604 = vdwg.mxu0
    %v1605 = vld [vmem:[%s13] sm:$0xff]
    %v1606 = vld [vmem:[%s13 + $0x8] sm:$0xff]
    %v1607 = vld [vmem:[%s13 + $0x10] sm:$0xff]
    %v1608 = vld [vmem:[%s13 + $0x18] sm:$0xff]
    %v1609 = vld [vmem:[%s13 + $0x20] sm:$0xff]
    %v1610 = vld [vmem:[%s13 + $0x28] sm:$0xff]
    %v1611 = vld [vmem:[%s13 + $0x30] sm:$0xff]
    %v1612 = vld [vmem:[%s13 + $0x38] sm:$0xff]
    %v1613 = vld [vmem:[%s13 + $0x40] sm:$0xff]
    %v1614 = vld [vmem:[%s13 + $0x48] sm:$0xff]
    %v1615 = vld [vmem:[%s13 + $0x50] sm:$0xff]
    %v1616 = vld [vmem:[%s13 + $0x58] sm:$0xff]
    %v1617 = vld [vmem:[%s13 + $0x60] sm:$0xff]
    %v1618 = vld [vmem:[%s13 + $0x68] sm:$0xff]
    %v1619 = vld [vmem:[%s13 + $0x70] sm:$0xff]
    %v1620 = vld [vmem:[%s13 + $0x78] sm:$0xff]
    %v1621 = vld [vmem:[%s13 + $0x80] sm:$0xff]
    %v1622 = vld [vmem:[%s13 + $0x88] sm:$0xff]
    %v1623 = vld [vmem:[%s13 + $0x90] sm:$0xff]
    %v1624 = vld [vmem:[%s13 + $0x98] sm:$0xff]
    %v1625 = vld [vmem:[%s13 + $0xa0] sm:$0xff]
    %v1626 = vld [vmem:[%s13 + $0xa8] sm:$0xff]
    %v1627 = vld [vmem:[%s13 + $0xb0] sm:$0xff]
    %v1628 = vld [vmem:[%s13 + $0xb8] sm:$0xff]
    %v1629 = vld [vmem:[%s13 + $0xc0] sm:$0xff]
    %v1630 = vld [vmem:[%s13 + $0xc8] sm:$0xff]
    %v1631 = vld [vmem:[%s13 + $0xd0] sm:$0xff]
    %v1632 = vld [vmem:[%s13 + $0xd8] sm:$0xff]
    %v1633 = vld [vmem:[%s13 + $0xe0] sm:$0xff]
    %v1634 = vld [vmem:[%s13 + $0xe8] sm:$0xff]
    %v1635 = vld [vmem:[%s13 + $0xf0] sm:$0xff]
    %v1636 = vld [vmem:[%s13 + $0xf8] sm:$0xff]
    %1637 = vmatprep.subr.mxu0 0.0
    %1638 = vmatpush1.msra.mxu0 %v1605
    %1639 = vmatprep.subr.mxu0 0.0
    %1640 = vmatpush1.msra.mxu0 %v1606
    %1641 = vmatprep.subr.mxu0 0.0
    %1642 = vmatpush1.msra.mxu0 %v1607
    %1643 = vmatprep.subr.mxu0 0.0
    %1644 = vmatpush1.msra.mxu0 %v1608
    %1645 = vmatprep.subr.mxu0 0.0
    %1646 = vmatpush1.msra.mxu0 %v1609
    %1647 = vmatprep.subr.mxu0 0.0
    %1648 = vmatpush1.msra.mxu0 %v1610
    %1649 = vmatprep.subr.mxu0 0.0
    %1650 = vmatpush1.msra.mxu0 %v1611
    %1651 = vmatprep.subr.mxu0 0.0
    %1652 = vmatpush1.msra.mxu0 %v1612
    %1653 = vmatprep.subr.mxu0 0.0
    %1654 = vmatpush1.msra.mxu0 %v1613
    %1655 = vmatprep.subr.mxu0 0.0
    %1656 = vmatpush1.msra.mxu0 %v1614
    %1657 = vmatprep.subr.mxu0 0.0
    %1658 = vmatpush1.msra.mxu0 %v1615
    %1659 = vmatprep.subr.mxu0 0.0
    %1660 = vmatpush1.msra.mxu0 %v1616
    %1661 = vmatprep.subr.mxu0 0.0
    %1662 = vmatpush1.msra.mxu0 %v1617
    %1663 = vmatprep.subr.mxu0 0.0
    %1664 = vmatpush1.msra.mxu0 %v1618
    %1665 = vmatprep.subr.mxu0 0.0
    %1666 = vmatpush1.msra.mxu0 %v1619
    %1667 = vmatprep.subr.mxu0 0.0
    %1668 = vmatpush1.msra.mxu0 %v1620
    %1669 = vmatprep.subr.mxu0 0.0
    %1670 = vmatpush1.msra.mxu0 %v1621
    %1671 = vmatprep.subr.mxu0 0.0
    %1672 = vmatpush1.msra.mxu0 %v1622
    %1673 = vmatprep.subr.mxu0 0.0
    %1674 = vmatpush1.msra.mxu0 %v1623
    %1675 = vmatprep.subr.mxu0 0.0
    %1676 = vmatpush1.msra.mxu0 %v1624
    %1677 = vmatprep.subr.mxu0 0.0
    %1678 = vmatpush1.msra.mxu0 %v1625
    %1679 = vmatprep.subr.mxu0 0.0
    %1680 = vmatpush1.msra.mxu0 %v1626
    %1681 = vmatprep.subr.mxu0 0.0
    %1682 = vmatpush1.msra.mxu0 %v1627
    %1683 = vmatprep.subr.mxu0 0.0
    %1684 = vmatpush1.msra.mxu0 %v1628
    %1685 = vmatprep.subr.mxu0 0.0
    %1686 = vmatpush1.msra.mxu0 %v1629
    %1687 = vmatprep.subr.mxu0 0.0
    %1688 = vmatpush1.msra.mxu0 %v1630
    %1689 = vmatprep.subr.mxu0 0.0
    %1690 = vmatpush1.msra.mxu0 %v1631
    %1691 = vmatprep.subr.mxu0 0.0
    %1692 = vmatpush1.msra.mxu0 %v1632
    %1693 = vmatprep.subr.mxu0 0.0
    %1694 = vmatpush1.msra.mxu0 %v1633
    %1695 = vmatprep.subr.mxu0 0.0
    %1696 = vmatpush1.msra.mxu0 %v1634
    %1697 = vmatprep.subr.mxu0 0.0
    %1698 = vmatpush1.msra.mxu0 %v1635
    %1699 = vmatprep.subr.mxu0 0.0
    %1700 = vmatpush1.msra.mxu0 %v1636
    %1701 = vmatprep.mubr.f32.mxu0 %v1603
    %1702 = vmatmul.mubr.f32.gmra.mrb[0].mxu0 %v1601
    %v1703 = vpop.f32.mrb[0].mxu0
    %v1704 = vadd.f32 0.0, %v1703
    %v1705 = vpop.f32.mrb[0].mxu0
    %1706 = vdwg.mxu0
    %v1707 = vld [vmem:[%s14] sm:$0x1]
    %v1709 = vlaneseq
    %v1710 = vshrl.u32 %v1709, 7
    %v1711 = vsub.s32 0, %v1710
    %v1712 = vrot.slane %v1707, %v1711
    %v1714 = vmul.f32 %v1704, %v1712
    %v1715 = vld [vmem:[%s15] sm:$0x1]
    %v1717 = vlaneseq
    %v1718 = vshrl.u32 %v1717, 7
    %v1719 = vsub.s32 0, %v1718
    %v1720 = vrot.slane %v1715, %v1719
    %v1722 = vadd.f32 %v1714, %v1720
    %v1723 = vadd.f32 %v1722, 3.0
    %v1724 = vmax.f32 %v1723, 0.0
    %v1725 = vmin.f32 %v1724, 6.0
    %v1726 = vmul.f32 %v1722, %v1725
    %v1727 = vmul.f32 %v1726, 0.16666667
    %v1728 = vld [vmem:[#allocation16] sm:$0xff]
    %v1729 = vld [vmem:[#allocation16 + $0x8] sm:$0xff]
    %v1730 = vld [vmem:[#allocation16 + $0x10] sm:$0xff]
    %v1731 = vld [vmem:[#allocation16 + $0x18] sm:$0xff]
    %v1732 = vld [vmem:[#allocation16 + $0x20] sm:$0xff]
    %v1733 = vld [vmem:[#allocation16 + $0x28] sm:$0xff]
    %v1734 = vld [vmem:[#allocation16 + $0x30] sm:$0xff]
    %v1735 = vld [vmem:[#allocation16 + $0x38] sm:$0xff]
    %v1737 = vsel %vm1530, %v1727, 0
    %1739 = vmatprep.subr.mxu0 %v1729
    %1740 = vmatpush1.msra.mxu0 %v1728
    %1741 = vmatprep.subr.mxu0 %v1731
    %1742 = vmatpush1.msra.mxu0 %v1730
    %1743 = vmatprep.subr.mxu0 %v1733
    %1744 = vmatpush1.msra.mxu0 %v1732
    %1745 = vmatprep.subr.mxu0 %v1735
    %1746 = vmatpush1.msra.mxu0 %v1734
    %1747 = vmatprep.subr.mxu0 0.0
    %1748 = vmatpush1.msra.mxu0 0.0
    %1749 = vmatprep.subr.mxu0 0.0
    %1750 = vmatpush1.msra.mxu0 0.0
    %1751 = vmatprep.subr.mxu0 0.0
    %1752 = vmatpush1.msra.mxu0 0.0
    %1753 = vmatprep.subr.mxu0 0.0
    %1754 = vmatpush1.msra.mxu0 0.0
    %1755 = vmatprep.subr.mxu0 0.0
    %1756 = vmatpush1.msra.mxu0 0.0
    %1757 = vmatprep.subr.mxu0 0.0
    %1758 = vmatpush1.msra.mxu0 0.0
    %1759 = vmatprep.subr.mxu0 0.0
    %1760 = vmatpush1.msra.mxu0 0.0
    %1761 = vmatprep.subr.mxu0 0.0
    %1762 = vmatpush1.msra.mxu0 0.0
    %1763 = vmatprep.subr.mxu0 0.0
    %1764 = vmatpush1.msra.mxu0 0.0
    %1765 = vmatprep.subr.mxu0 0.0
    %1766 = vmatpush1.msra.mxu0 0.0
    %1767 = vmatprep.subr.mxu0 0.0
    %1768 = vmatpush1.msra.mxu0 0.0
    %1769 = vmatprep.subr.mxu0 0.0
    %1770 = vmatpush1.msra.mxu0 0.0
    %1771 = vmatprep.subr.mxu0 0.0
    %1772 = vmatpush1.msra.mxu0 0.0
    %1773 = vmatprep.subr.mxu0 0.0
    %1774 = vmatpush1.msra.mxu0 0.0
    %1775 = vmatprep.subr.mxu0 0.0
    %1776 = vmatpush1.msra.mxu0 0.0
    %1777 = vmatprep.subr.mxu0 0.0
    %1778 = vmatpush1.msra.mxu0 0.0
    %1779 = vmatprep.subr.mxu0 0.0
    %1780 = vmatpush1.msra.mxu0 0.0
    %1781 = vmatprep.subr.mxu0 0.0
    %1782 = vmatpush1.msra.mxu0 0.0
    %1783 = vmatprep.subr.mxu0 0.0
    %1784 = vmatpush1.msra.mxu0 0.0
    %1785 = vmatprep.subr.mxu0 0.0
    %1786 = vmatpush1.msra.mxu0 0.0
    %1787 = vmatprep.subr.mxu0 0.0
    %1788 = vmatpush1.msra.mxu0 0.0
    %1789 = vmatprep.subr.mxu0 0.0
    %1790 = vmatpush1.msra.mxu0 0.0
    %1791 = vmatprep.subr.mxu0 0.0
    %1792 = vmatpush1.msra.mxu0 0.0
    %1793 = vmatprep.subr.mxu0 0.0
    %1794 = vmatpush1.msra.mxu0 0.0
    %1795 = vmatprep.subr.mxu0 0.0
    %1796 = vmatpush1.msra.mxu0 0.0
    %1797 = vmatprep.subr.mxu0 0.0
    %1798 = vmatpush1.msra.mxu0 0.0
    %1799 = vmatprep.subr.mxu0 0.0
    %1800 = vmatpush1.msra.mxu0 0.0
    %1801 = vmatprep.subr.mxu0 0.0
    %1802 = vmatpush1.msra.mxu0 0.0
    %1803 = vmatprep.mubr.f32.mxu0 0.0
    %1804 = vmatmul.mubr.f32.gmra.mrb[0].mxu0 %v1737
    %v1805 = vpop.f32.mrb[0].mxu0
    %v1806 = vadd.f32 0.0, %v1805
    %v1807 = vpop.f32.mrb[0].mxu0
    %v1808 = vadd.f32 0.0, %v1807
    %1809 = vdwg.mxu0
    %v1810 = vxor.u32 %v1806, 2147483648
    %v1811 = vxor.u32 %v1808, 2147483648
    %v1812 = vmul.f32 %v1810, 1.442695
    %v1813 = vpow.pop %v1812
    %v1814 = vmul.f32 %v1811, 1.442695
    %v1815 = vpow.pop %v1814
    %v1816 = vadd.f32 %v1813, 1.0
    %v1817 = vadd.f32 %v1815, 1.0
    %v1818 = vrcp.pop %v1816
    %v1819 = vmul.f32 1.0, %v1818
    %v1820 = vrcp.pop %v1817
    %v1821 = vmul.f32 1.0, %v1820
    %v1822 = vld [vmem:[%s17] sm:$0xff]
    %v1823 = vld [vmem:[%s17 + $0x8] sm:$0xff]
    %v1824 = vld [vmem:[%s17 + $0x10] sm:$0xff]
    %v1825 = vld [vmem:[%s17 + $0x18] sm:$0xff]
    %v1827 = vsel %vm1374, %v1822, 0
    %v1830 = vsel %vm1374, %v1823, 0
    %v1833 = vsel %vm1374, %v1824, 0
    %v1836 = vsel %vm1374, %v1825, 0
    %v1839 = vsel %vm1387, %v1819, 0
    %v1842 = vsel %vm1387, %v1821, 0
    %1844 = vmatprep.subr.mxu0 %v1842
    %1845 = vmatpush1.msra.mxu0 %v1839
    %1846 = vmatprep.subr.mxu0 0.0
    %1847 = vmatpush1.msra.mxu0 0.0
    %1848 = vmatprep.subr.mxu0 0.0
    %1849 = vmatpush1.msra.mxu0 0.0
    %1850 = vmatprep.subr.mxu0 0.0
    %1851 = vmatpush1.msra.mxu0 0.0
    %1852 = vmatprep.subr.mxu0 0.0
    %1853 = vmatpush1.msra.mxu0 0.0
    %1854 = vmatprep.subr.mxu0 0.0
    %1855 = vmatpush1.msra.mxu0 0.0
    %1856 = vmatprep.subr.mxu0 0.0
    %1857 = vmatpush1.msra.mxu0 0.0
    %1858 = vmatprep.subr.mxu0 0.0
    %1859 = vmatpush1.msra.mxu0 0.0
    %1860 = vmatprep.subr.mxu0 0.0
    %1861 = vmatpush1.msra.mxu0 0.0
    %1862 = vmatprep.subr.mxu0 0.0
    %1863 = vmatpush1.msra.mxu0 0.0
    %1864 = vmatprep.subr.mxu0 0.0
    %1865 = vmatpush1.msra.mxu0 0.0
    %1866 = vmatprep.subr.mxu0 0.0
    %1867 = vmatpush1.msra.mxu0 0.0
    %1868 = vmatprep.subr.mxu0 0.0
    %1869 = vmatpush1.msra.mxu0 0.0
    %1870 = vmatprep.subr.mxu0 0.0
    %1871 = vmatpush1.msra.mxu0 0.0
    %1872 = vmatprep.subr.mxu0 0.0
    %1873 = vmatpush1.msra.mxu0 0.0
    %1874 = vmatprep.subr.mxu0 0.0
    %1875 = vmatpush1.msra.mxu0 0.0
    %1876 = vmatprep.subr.mxu0 0.0
    %1877 = vmatpush1.msra.mxu0 0.0
    %1878 = vmatprep.subr.mxu0 0.0
    %1879 = vmatpush1.msra.mxu0 0.0
    %1880 = vmatprep.subr.mxu0 0.0
    %1881 = vmatpush1.msra.mxu0 0.0
    %1882 = vmatprep.subr.mxu0 0.0
    %1883 = vmatpush1.msra.mxu0 0.0
    %1884 = vmatprep.subr.mxu0 0.0
    %1885 = vmatpush1.msra.mxu0 0.0
    %1886 = vmatprep.subr.mxu0 0.0
    %1887 = vmatpush1.msra.mxu0 0.0
    %1888 = vmatprep.subr.mxu0 0.0
    %1889 = vmatpush1.msra.mxu0 0.0
    %1890 = vmatprep.subr.mxu0 0.0
    %1891 = vmatpush1.msra.mxu0 0.0
    %1892 = vmatprep.subr.mxu0 0.0
    %1893 = vmatpush1.msra.mxu0 0.0
    %1894 = vmatprep.subr.mxu0 0.0
    %1895 = vmatpush1.msra.mxu0 0.0
    %1896 = vmatprep.subr.mxu0 0.0
    %1897 = vmatpush1.msra.mxu0 0.0
    %1898 = vmatprep.subr.mxu0 0.0
    %1899 = vmatpush1.msra.mxu0 0.0
    %1900 = vmatprep.subr.mxu0 0.0
    %1901 = vmatpush1.msra.mxu0 0.0
    %1902 = vmatprep.subr.mxu0 0.0
    %1903 = vmatpush1.msra.mxu0 0.0
    %1904 = vmatprep.subr.mxu0 0.0
    %1905 = vmatpush1.msra.mxu0 0.0
    %1906 = vmatprep.subr.mxu0 0.0
    %1907 = vmatpush1.msra.mxu0 0.0
    %1908 = vmatprep.mubr.f32.mxu0 0.0
    %1909 = vmatmul.mubr.f32.gmra.mrb[0].mxu0 %v1827
    %v1910 = vpop.f32.mrb[0].mxu0
    %v1911 = vadd.f32 0.0, %v1910
    %v1912 = vpop.f32.mrb[0].mxu0
    %v1913 = vadd.f32 0.0, %v1912
    %1914 = vmatprep.mubr.f32.mxu0 0.0
    %1915 = vmatmul.mubr.f32.gmra.mrb[0].mxu0 %v1830
    %v1916 = vpop.f32.mrb[0].mxu0
    %v1917 = vadd.f32 0.0, %v1916
    %v1918 = vpop.f32.mrb[0].mxu0
    %v1919 = vadd.f32 0.0, %v1918
    %1920 = vmatprep.mubr.f32.mxu0 0.0
    %1921 = vmatmul.mubr.f32.gmra.mrb[0].mxu0 %v1833
    %v1922 = vpop.f32.mrb[0].mxu0
    %v1923 = vadd.f32 0.0, %v1922
    %v1924 = vpop.f32.mrb[0].mxu0
    %v1925 = vadd.f32 0.0, %v1924
    %1926 = vmatprep.mubr.f32.mxu0 0.0
    %1927 = vmatmul.mubr.f32.gmra.mrb[0].mxu0 %v1836
    %v1928 = vpop.f32.mrb[0].mxu0
    %v1929 = vadd.f32 0.0, %v1928
    %v1930 = vpop.f32.mrb[0].mxu0
    %v1931 = vadd.f32 0.0, %v1930
    %1932 = vdwg.mxu0
    %v1933 = vld [vmem:[%s18] sm:$0xff]
    %v1934 = vld [vmem:[%s18 + $0x8] sm:$0xff]
    %v1935 = vld [vmem:[%s18 + $0x10] sm:$0xff]
    %v1936 = vld [vmem:[%s18 + $0x18] sm:$0xff]
    %v1937 = vld [vmem:[%s18 + $0x20] sm:$0xff]
    %v1938 = vld [vmem:[%s18 + $0x28] sm:$0xff]
    %v1939 = vld [vmem:[%s18 + $0x30] sm:$0xff]
    %v1940 = vld [vmem:[%s18 + $0x38] sm:$0xff]
    %v1941 = vld [vmem:[%s18 + $0x40] sm:$0xff]
    %v1942 = vld [vmem:[%s18 + $0x48] sm:$0xff]
    %v1943 = vld [vmem:[%s18 + $0x50] sm:$0xff]
    %v1944 = vld [vmem:[%s18 + $0x58] sm:$0xff]
    %v1945 = vld [vmem:[%s18 + $0x60] sm:$0xff]
    %v1946 = vld [vmem:[%s18 + $0x68] sm:$0xff]
    %v1947 = vld [vmem:[%s18 + $0x70] sm:$0xff]
    %v1948 = vld [vmem:[%s18 + $0x78] sm:$0xff]
    %v1965 = vunpack.c.l.b16 %v1933
    %v1966 = vunpack.c.h.b16 %v1933
    %v1967 = vunpack.c.l.b16 %v1934
    %v1968 = vunpack.c.h.b16 %v1934
    %v1969 = vunpack.c.l.b16 %v1935
    %v1970 = vunpack.c.h.b16 %v1935
    %v1971 = vunpack.c.l.b16 %v1936
    %v1972 = vunpack.c.h.b16 %v1936
    %v1973 = vunpack.c.l.b16 %v1937
    %v1974 = vunpack.c.h.b16 %v1937
    %v1975 = vunpack.c.l.b16 %v1938
    %v1976 = vunpack.c.h.b16 %v1938
    %v1977 = vunpack.c.l.b16 %v1939
    %v1978 = vunpack.c.h.b16 %v1939
    %v1979 = vunpack.c.l.b16 %v1940
    %v1980 = vunpack.c.h.b16 %v1940
    %v1981 = vunpack.c.l.b16 %v1941
    %v1982 = vunpack.c.h.b16 %v1941
    %v1983 = vunpack.c.l.b16 %v1942
    %v1984 = vunpack.c.h.b16 %v1942
    %v1985 = vunpack.c.l.b16 %v1943
    %v1986 = vunpack.c.h.b16 %v1943
    %v1987 = vunpack.c.l.b16 %v1944
    %v1988 = vunpack.c.h.b16 %v1944
    %v1989 = vunpack.c.l.b16 %v1945
    %v1990 = vunpack.c.h.b16 %v1945
    %v1991 = vunpack.c.l.b16 %v1946
    %v1992 = vunpack.c.h.b16 %v1946
    %v1993 = vunpack.c.l.b16 %v1947
    %v1994 = vunpack.c.h.b16 %v1947
    %v1995 = vunpack.c.l.b16 %v1948
    %v1996 = vunpack.c.h.b16 %v1948
    %v1997 = vpack.c.b16 %v1967, %v1965
    %v1998 = vpack.c.b16 %v1968, %v1966
    %v1999 = vpack.c.b16 %v1971, %v1969
    %v2000 = vpack.c.b16 %v1972, %v1970
    %v2001 = vpack.c.b16 %v1975, %v1973
    %v2002 = vpack.c.b16 %v1976, %v1974
    %v2003 = vpack.c.b16 %v1979, %v1977
    %v2004 = vpack.c.b16 %v1980, %v1978
    %v2005 = vpack.c.b16 %v1983, %v1981
    %v2006 = vpack.c.b16 %v1984, %v1982
    %v2007 = vpack.c.b16 %v1987, %v1985
    %v2008 = vpack.c.b16 %v1988, %v1986
    %v2009 = vpack.c.b16 %v1991, %v1989
    %v2010 = vpack.c.b16 %v1992, %v1990
    %v2011 = vpack.c.b16 %v1995, %v1993
    %v2012 = vpack.c.b16 %v1996, %v1994
    %2029 = vmatprep.subr.bf16.mxu0 %v1998
    %2030 = vmatpush1.bf16.msra.mxu0 %v1997
    %2031 = vmatprep.subr.bf16.mxu0 %v2000
    %2032 = vmatpush1.bf16.msra.mxu0 %v1999
    %2033 = vmatprep.subr.bf16.mxu0 %v2002
    %2034 = vmatpush1.bf16.msra.mxu0 %v2001
    %2035 = vmatprep.subr.bf16.mxu0 %v2004
    %2036 = vmatpush1.bf16.msra.mxu0 %v2003
    %2037 = vmatprep.subr.bf16.mxu0 %v2006
    %2038 = vmatpush1.bf16.msra.mxu0 %v2005
    %2039 = vmatprep.subr.bf16.mxu0 %v2008
    %2040 = vmatpush1.bf16.msra.mxu0 %v2007
    %2041 = vmatprep.subr.bf16.mxu0 %v2010
    %2042 = vmatpush1.bf16.msra.mxu0 %v2009
    %2043 = vmatprep.subr.bf16.mxu0 %v2012
    %2044 = vmatpush1.bf16.msra.mxu0 %v2011
    %2045 = vmatprep.subr.bf16.mxu0 0
    %2046 = vmatpush1.bf16.msra.mxu0 0
    %2047 = vmatprep.subr.bf16.mxu0 0
    %2048 = vmatpush1.bf16.msra.mxu0 0
    %2049 = vmatprep.subr.bf16.mxu0 0
    %2050 = vmatpush1.bf16.msra.mxu0 0
    %2051 = vmatprep.subr.bf16.mxu0 0
    %2052 = vmatpush1.bf16.msra.mxu0 0
    %2053 = vmatprep.subr.bf16.mxu0 0
    %2054 = vmatpush1.bf16.msra.mxu0 0
    %2055 = vmatprep.subr.bf16.mxu0 0
    %2056 = vmatpush1.bf16.msra.mxu0 0
    %2057 = vmatprep.subr.bf16.mxu0 0
    %2058 = vmatpush1.bf16.msra.mxu0 0
    %2059 = vmatprep.subr.bf16.mxu0 0
    %2060 = vmatpush1.bf16.msra.mxu0 0
    %2061 = vmatprep.mubr.bf16.mxu0 0
    %2062 = vmatmul.mubr.bf16.gmra.mrb[0].mxu0 %v184
    %v2063 = vpop.f32.mrb[0].mxu0
    %v2064 = vadd.f32 0.0, %v2063
    %v2065 = vpop.f32.mrb[0].mxu0
    %v2066 = vadd.f32 0.0, %v2065
    %v2067 = vpop.f32.mrb[0].mxu0
    %v2068 = vadd.f32 0.0, %v2067
    %v2069 = vpop.f32.mrb[0].mxu0
    %v2070 = vadd.f32 0.0, %v2069
    %2071 = vmatprep.mubr.bf16.mxu0 0
    %2072 = vmatmul.mubr.bf16.gmra.mrb[0].mxu0 %v185
    %v2073 = vpop.f32.mrb[0].mxu0
    %v2074 = vadd.f32 0.0, %v2073
    %v2075 = vpop.f32.mrb[0].mxu0
    %v2076 = vadd.f32 0.0, %v2075
    %v2077 = vpop.f32.mrb[0].mxu0
    %v2078 = vadd.f32 0.0, %v2077
    %v2079 = vpop.f32.mrb[0].mxu0
    %v2080 = vadd.f32 0.0, %v2079
    %2081 = vdwg.mxu0
    %v2082 = vld [vmem:[%s19] sm:$0x3]
    %v2084 = vlaneseq
    %v2085 = vshrl.u32 %v2084, 7
    %v2086 = vsub.s32 0, %v2085
    %v2087 = vrot.slane %v2082, %v2086
    %v2088 = vlaneseq
    %v2089 = vshrl.u32 %v2088, 7
    %v2090 = vsub.s32 1, %v2089
    %v2091 = vrot.slane %v2082, %v2090
    %v2094 = vmul.f32 %v2064, %v2087
    %v2095 = vmul.f32 %v2066, %v2091
    %v2096 = vmul.f32 %v2068, %v2087
    %v2097 = vmul.f32 %v2070, %v2091
    %v2098 = vmul.f32 %v2074, %v2087
    %v2099 = vmul.f32 %v2076, %v2091
    %v2100 = vmul.f32 %v2078, %v2087
    %v2101 = vmul.f32 %v2080, %v2091
    %v2102 = vld [vmem:[%s20] sm:$0x3]
    %v2104 = vlaneseq
    %v2105 = vshrl.u32 %v2104, 7
    %v2106 = vsub.s32 0, %v2105
    %v2107 = vrot.slane %v2102, %v2106
    %v2108 = vlaneseq
    %v2109 = vshrl.u32 %v2108, 7
    %v2110 = vsub.s32 1, %v2109
    %v2111 = vrot.slane %v2102, %v2110
    %v2114 = vadd.f32 %v2094, %v2107
    %v2115 = vadd.f32 %v2095, %v2111
    %v2116 = vadd.f32 %v2096, %v2107
    %v2117 = vadd.f32 %v2097, %v2111
    %v2118 = vadd.f32 %v2098, %v2107
    %v2119 = vadd.f32 %v2099, %v2111
    %v2120 = vadd.f32 %v2100, %v2107
    %v2121 = vadd.f32 %v2101, %v2111
    %v2122 = vmul.f32 %v1097, %v1514
    %v2123 = vmul.f32 %v1098, %v1516
    %v2124 = vmul.f32 %v1099, %v1518
    %v2125 = vmul.f32 %v1100, %v1520
    %v2126 = vmul.f32 %v1101, %v1522
    %v2127 = vmul.f32 %v1102, %v1524
    %v2128 = vmul.f32 %v1103, %v1526
    %v2129 = vmul.f32 %v1104, %v1528
    %v2130 = vmul.f32 %v2122, %v1911
    %v2131 = vmul.f32 %v2123, %v1913
    %v2132 = vmul.f32 %v2124, %v1917
    %v2133 = vmul.f32 %v2125, %v1919
    %v2134 = vmul.f32 %v2126, %v1923
    %v2135 = vmul.f32 %v2127, %v1925
    %v2136 = vmul.f32 %v2128, %v1929
    %v2137 = vmul.f32 %v2129, %v1931
    %v2138 = vadd.f32 %v2130, %v2114
    %v2139 = vadd.f32 %v2131, %v2115
    %v2140 = vadd.f32 %v2132, %v2116
    %v2141 = vadd.f32 %v2133, %v2117
    %v2142 = vadd.f32 %v2134, %v2118
    %v2143 = vadd.f32 %v2135, %v2119
    %v2144 = vadd.f32 %v2136, %v2120
    %v2145 = vadd.f32 %v2137, %v2121
    %vm2146 = vcmp.gt.f32.partialorder %v2138, 0.0
    %vm2147 = vcmp.gt.f32.partialorder %v2139, 0.0
    %vm2148 = vcmp.gt.f32.partialorder %v2140, 0.0
    %vm2149 = vcmp.gt.f32.partialorder %v2141, 0.0
    %vm2150 = vcmp.gt.f32.partialorder %v2142, 0.0
    %vm2151 = vcmp.gt.f32.partialorder %v2143, 0.0
    %vm2152 = vcmp.gt.f32.partialorder %v2144, 0.0
    %vm2153 = vcmp.gt.f32.partialorder %v2145, 0.0
    %v2154 = vmul.f32 %v2138, 0.01
    %v2155 = vmul.f32 %v2139, 0.01
    %v2156 = vmul.f32 %v2140, 0.01
    %v2157 = vmul.f32 %v2141, 0.01
    %v2158 = vmul.f32 %v2142, 0.01
    %v2159 = vmul.f32 %v2143, 0.01
    %v2160 = vmul.f32 %v2144, 0.01
    %v2161 = vmul.f32 %v2145, 0.01
    %v2162 = vsel %vm2146, %v2138, %v2154
    %v2163 = vsel %vm2147, %v2139, %v2155
    %v2164 = vsel %vm2148, %v2140, %v2156
    %v2165 = vsel %vm2149, %v2141, %v2157
    %v2166 = vsel %vm2150, %v2142, %v2158
    %v2167 = vsel %vm2151, %v2143, %v2159
    %v2168 = vsel %vm2152, %v2144, %v2160
    %v2169 = vsel %vm2153, %v2145, %v2161
    %2170 = vst [vmem:[#allocation17] sm:$0xff] %v2162
    %2171 = vst [vmem:[#allocation17 + $0x8] sm:$0xff] %v2163
    %2172 = vst [vmem:[#allocation17 + $0x10] sm:$0xff] %v2164
    %2173 = vst [vmem:[#allocation17 + $0x18] sm:$0xff] %v2165
    %2174 = vst [vmem:[#allocation17 + $0x20] sm:$0xff] %v2166
    %2175 = vst [vmem:[#allocation17 + $0x28] sm:$0xff] %v2167
    %2176 = vst [vmem:[#allocation17 + $0x30] sm:$0xff] %v2168
    %2177 = vst [vmem:[#allocation17 + $0x38] sm:$0xff] %v2169
    // Predicated region
    $region122: #{tpu_custom_call.1} parent=1 // pred_check
      _
    $region123: #{tpu_custom_call.1} parent=1 // pred_check_branch
      %2179 = sbr.rel (0) target = $region125
    $region124: #{tpu_custom_call.1} parent=1 // pred_region
      %s2181 = ssub.s32 1024, 1024
      %2182 = vsyncadd [#allocation4], %s2181
      %s2183 = sshll.u32 [#allocation17], 4
      %s2184 = int_to_ptr.vmem [resolvable:$true] %s2183
      %2189 = dma.vmem_to_hbm [thread:$0]  %s2184, 1024, %s21, [#allocation4], 256, 256, 16
    $region125: #{tpu_custom_call.1} parent=1 // pred_fallthru
      _
    // Predicated region
    $region126: #{tpu_custom_call.1} parent=1 // pred_check
      _
    $region127: #{tpu_custom_call.1} parent=1 // pred_check_branch
      %2191 = sbr.rel (0) target = $region129
    $region128: #{tpu_custom_call.1} parent=1 // pred_region
      %2192 = dma.done [#allocation4], 1024
    $region129: #{tpu_custom_call.1} parent=1 // pred_fallthru
      _
    %2193 = vsyncpa [#allocation3], 1
    %2194 = vsyncpa [#allocation6], 1
    %2195 = vsyncpa [#allocation9], 1
    %2196 = vsyncpa [#allocation12], 1
    %2197 = vsyncpa [#allocation15], 1
    %2198 = vsyncpa [#allocation4], 1

</llo_original>
